<compile_context>
chip_gen: v5e
topology: v5e:2x2
jax: 0.10.0
libtpu: 0.0.40
codegen_flags: <defaults>
</compile_context>

<pallas_src>
import functools
import math

import jax
import jax.numpy as jnp
from jax.experimental import pallas as pl
from jax.experimental.pallas import tpu as pltpu

# ----------------------- synthetic BERT configuration -----------------------
VOCAB = 50
MAX_POS = 16
HIDDEN = 32          # stands in for 768
HEADS = 2
HEAD_DIM = HIDDEN // HEADS
INTERMEDIATE = 64    # stands in for 3072
LAYERS = 2
NUM_CLASSES = 14     # nn.Linear(768, 14)
CLS_PAD = 128        # lane-dense padded width for the logits store
LN_EPS = 1e-12


# ------------------------------ in-kernel helpers -----------------------------
def _layer_norm(x, g, b):
    mean = jnp.mean(x, axis=-1, keepdims=True)
    cen = x - mean
    var = jnp.mean(cen * cen, axis=-1, keepdims=True)
    return cen * jax.lax.rsqrt(var + LN_EPS) * g + b


def _gelu(x):
    # TODO(synk): HF BERT uses exact erf-GELU; tanh approximation used for Mosaic-safe lowering.
    c = jnp.float32(math.sqrt(2.0 / math.pi))
    return 0.5 * x * (1.0 + jnp.tanh(c * (x + 0.044715 * x * x * x)))


# --------------------------- fused BERT forward kernel -------------------------
def _bert_kernel(h_ref, bias_ref, emb_g_ref, emb_b_ref,
                 wqkv_ref, bqkv_ref, wo_ref, bo_ref, ln1g_ref, ln1b_ref,
                 wi_ref, bi_ref, wf_ref, bf_ref, ln2g_ref, ln2b_ref,
                 pool_w_ref, pool_b_ref, cls_w_ref, cls_b_ref,
                 logits_ref, *, batch, seq):
    f32 = jnp.float32
    scale = jnp.float32(1.0 / math.sqrt(HEAD_DIM))

    # Embedding layernorm
    h = _layer_norm(h_ref[...], emb_g_ref[...], emb_b_ref[...])        # [B*S, H]
    bias = bias_ref[...]                                               # [B, S]

    for l in range(LAYERS):                                            # static unroll
        # Hoist per-layer weight loads out of the (batch, head) loops.
        wqkv = wqkv_ref[l]
        bqkv = bqkv_ref[l]
        wo = wo_ref[l]
        bo = bo_ref[l]
        wi = wi_ref[l]
        bi = bi_ref[l]
        wf = wf_ref[l]
        bf = bf_ref[l]

        # Fused QKV projection: one MXU pass, lane width 3*H
        qkv = jnp.dot(h, wqkv, preferred_element_type=f32) + bqkv      # [B*S, 3H]

        # Self-attention, per (batch, head), fully unrolled (tiny tiles)
        ctx_rows = []
        for b in range(batch):
            r0 = b * seq
            bias_b = bias[b:b + 1, :]                                   # [1, S] (broadcast over rows)
            head_cols = []
            for hh in range(HEADS):
                c0 = hh * HEAD_DIM
                q = qkv[r0:r0 + seq, c0:c0 + HEAD_DIM]                  # [S, D]
                k = qkv[r0:r0 + seq, HIDDEN + c0:HIDDEN + c0 + HEAD_DIM]
                v = qkv[r0:r0 + seq, 2 * HIDDEN + c0:2 * HIDDEN + c0 + HEAD_DIM]
                s = jax.lax.dot_general(
                    q, k, (((1,), (1,)), ((), ())),
                    preferred_element_type=f32) * scale + bias_b        # [S, S]
                s = s - jnp.max(s, axis=-1, keepdims=True)
                p = jnp.exp(s)
                p = p * pl.reciprocal(jnp.sum(p, axis=-1, keepdims=True), approx=True)
                head_cols.append(jnp.dot(p, v, preferred_element_type=f32))   # [S, D]
            ctx_rows.append(jnp.concatenate(head_cols, axis=-1))              # [S, H]
        ctx = jnp.concatenate(ctx_rows, axis=0)                                # [B*S, H]

        # Output projection + residual + LN1 (fused, stays in vregs)
        attn_out = jnp.dot(ctx, wo, preferred_element_type=f32) + bo
        h = _layer_norm(h + attn_out, ln1g_ref[l], ln1b_ref[l])

        # FFN (gelu) + output proj + residual + LN2
        ffn = _gelu(jnp.dot(h, wi, preferred_element_type=f32) + bi)
        ffn = jnp.dot(ffn, wf, preferred_element_type=f32) + bf
        h = _layer_norm(h + ffn, ln2g_ref[l], ln2b_ref[l])

    # Pooler on the CLS token of each sequence, then classifier head.
    # Dropout(0.5) is identity in eval mode.
    cls = jnp.concatenate([h[b * seq:b * seq + 1, :] for b in range(batch)], axis=0)  # [B, H]
    pooled = jnp.tanh(jnp.dot(cls, pool_w_ref[...], preferred_element_type=f32)
                      + pool_b_ref[...])
    # Lane-dense (128-wide, zero-padded) logits store; sliced to NUM_CLASSES in JAX.
    logits_ref[...] = (jnp.dot(pooled, cls_w_ref[...], preferred_element_type=f32)
                       + cls_b_ref[...])


# ------------------------------- parameter init ------------------------------
def init_params(key):
    def nrm(k, shape, scale=0.02):
        return (scale * jax.random.normal(k, shape)).astype(jnp.float32)

    ks = iter(jax.random.split(key, 16))
    cls_w = nrm(next(ks), (HIDDEN, NUM_CLASSES))
    return {
        "word_emb": nrm(next(ks), (VOCAB, HIDDEN)),
        "pos_emb": nrm(next(ks), (MAX_POS, HIDDEN)),
        "type_emb": nrm(next(ks), (2, HIDDEN)),
        "emb_ln_g": jnp.ones((1, HIDDEN), jnp.float32),
        "emb_ln_b": jnp.zeros((1, HIDDEN), jnp.float32),
        # per-layer weights stacked along a leading layer axis (static-indexed in kernel)
        "wqkv": nrm(next(ks), (LAYERS, HIDDEN, 3 * HIDDEN)),   # [wq | wk | wv]
        "bqkv": jnp.zeros((LAYERS, 1, 3 * HIDDEN), jnp.float32),
        "wo": nrm(next(ks), (LAYERS, HIDDEN, HIDDEN)),
        "bo": jnp.zeros((LAYERS, 1, HIDDEN), jnp.float32),
        "ln1_g": jnp.ones((LAYERS, 1, HIDDEN), jnp.float32),
        "ln1_b": jnp.zeros((LAYERS, 1, HIDDEN), jnp.float32),
        "wi": nrm(next(ks), (LAYERS, HIDDEN, INTERMEDIATE)),
        "bi": jnp.zeros((LAYERS, 1, INTERMEDIATE), jnp.float32),
        "wf": nrm(next(ks), (LAYERS, INTERMEDIATE, HIDDEN)),
        "bf": jnp.zeros((LAYERS, 1, HIDDEN), jnp.float32),
        "ln2_g": jnp.ones((LAYERS, 1, HIDDEN), jnp.float32),
        "ln2_b": jnp.zeros((LAYERS, 1, HIDDEN), jnp.float32),
        "pool_w": nrm(next(ks), (HIDDEN, HIDDEN)),
        "pool_b": jnp.zeros((1, HIDDEN), jnp.float32),
        # classifier weight/bias zero-padded to 128 lanes for an unmasked store
        "cls_w": jnp.pad(cls_w, ((0, 0), (0, CLS_PAD - NUM_CLASSES))),
        "cls_b": jnp.zeros((1, CLS_PAD), jnp.float32),
    }


# ------------------------------- forward pass --------------------------------
@jax.jit
def bert_classify_forward(params, token_ids, attn_masks):
    B, S = token_ids.shape

    # Embedding gather (data-dependent; left to XLA). token_type_ids assumed all-zero.
    tok = jnp.take(params["word_emb"], token_ids, axis=0)          # [B,S,H]
    pos = params["pos_emb"][:S][None, :, :]                        # [1,S,H]
    typ = params["type_emb"][0][None, None, :]                     # [1,1,H]
    h = (tok + pos + typ).reshape(B * S, HIDDEN)

    # Additive attention-mask bias, shared across heads (no per-head repeat): [B, S]
    bias = (1.0 - attn_masks.astype(jnp.float32)) * -10000.0

    vmem = pl.BlockSpec(memory_space=pltpu.MemorySpace.VMEM)
    logits_pad = pl.pallas_call(
        functools.partial(_bert_kernel, batch=B, seq=S),
        out_shape=jax.ShapeDtypeStruct((B, CLS_PAD), jnp.float32),
        in_specs=[vmem] * 20,
        out_specs=vmem,
    )(h, bias, params["emb_ln_g"], params["emb_ln_b"],
      params["wqkv"], params["bqkv"], params["wo"], params["bo"],
      params["ln1_g"], params["ln1_b"],
      params["wi"], params["bi"], params["wf"], params["bf"],
      params["ln2_g"], params["ln2_b"],
      params["pool_w"], params["pool_b"], params["cls_w"], params["cls_b"])

    return logits_pad[:, :NUM_CLASSES]


# ------------------------------------ main ------------------------------------
if __name__ == "__main__":
    key = jax.random.PRNGKey(0)
    pkey, tkey = jax.random.split(key)
    params = init_params(pkey)

    B, S = 2, 8
    token_ids = jax.random.randint(tkey, (B, S), 0, VOCAB, dtype=jnp.int32)
    attn_masks = jnp.concatenate(
        [jnp.ones((B, S - 2), jnp.int32), jnp.zeros((B, 2), jnp.int32)], axis=1
    )

    logits = bert_classify_forward(params, token_ids, attn_masks)
    logits = jax.block_until_ready(logits)
    assert logits.shape == (B, NUM_CLASSES)
    assert bool(jnp.all(jnp.isfinite(logits)))
    print("KERNEL_OK")
</pallas_src>

<mosaic_0001>
module attributes {stable_mosaic.version = 11 : i64} {
  func.func @_bert_kernel(%arg0: memref<16x32xf32, #tpu.memory_space<vmem>>, %arg1: memref<2x8xf32, #tpu.memory_space<vmem>>, %arg2: memref<1x32xf32, #tpu.memory_space<vmem>>, %arg3: memref<1x32xf32, #tpu.memory_space<vmem>>, %arg4: memref<2x32x96xf32, #tpu.memory_space<vmem>>, %arg5: memref<2x1x96xf32, #tpu.memory_space<vmem>>, %arg6: memref<2x32x32xf32, #tpu.memory_space<vmem>>, %arg7: memref<2x1x32xf32, #tpu.memory_space<vmem>>, %arg8: memref<2x1x32xf32, #tpu.memory_space<vmem>>, %arg9: memref<2x1x32xf32, #tpu.memory_space<vmem>>, %arg10: memref<2x32x64xf32, #tpu.memory_space<vmem>>, %arg11: memref<2x1x64xf32, #tpu.memory_space<vmem>>, %arg12: memref<2x64x32xf32, #tpu.memory_space<vmem>>, %arg13: memref<2x1x32xf32, #tpu.memory_space<vmem>>, %arg14: memref<2x1x32xf32, #tpu.memory_space<vmem>>, %arg15: memref<2x1x32xf32, #tpu.memory_space<vmem>>, %arg16: memref<32x32xf32, #tpu.memory_space<vmem>>, %arg17: memref<1x32xf32, #tpu.memory_space<vmem>>, %arg18: memref<32x128xf32, #tpu.memory_space<vmem>>, %arg19: memref<1x128xf32, #tpu.memory_space<vmem>>, %arg20: memref<2x128xf32, #tpu.memory_space<vmem>>) attributes {dimension_semantics = [], scalar_prefetch = 0 : i64, scratch_operands = 0 : i64, tpu.core_type = #tpu.core_type<tc>} {
    %c0 = arith.constant 0 : index
    %c0_0 = arith.constant 0 : index
    %0 = vector.load %arg0[%c0, %c0_0] : memref<16x32xf32, #tpu.memory_space<vmem>>, vector<16x32xf32>
    %c0_1 = arith.constant 0 : index
    %c0_2 = arith.constant 0 : index
    %1 = vector.load %arg2[%c0_1, %c0_2] : memref<1x32xf32, #tpu.memory_space<vmem>>, vector<1x32xf32>
    %c0_3 = arith.constant 0 : index
    %c0_4 = arith.constant 0 : index
    %2 = vector.load %arg3[%c0_3, %c0_4] : memref<1x32xf32, #tpu.memory_space<vmem>>, vector<1x32xf32>
    %cst = arith.constant dense<0.000000e+00> : vector<16xf32>
    %3 = vector.multi_reduction <add>, %0, %cst [1] : vector<16x32xf32> to vector<16xf32>
    %4 = vector.shape_cast %3 : vector<16xf32> to vector<16x1xf32>
    %cst_5 = arith.constant 3.200000e+01 : f32
    %5 = vector.broadcast %cst_5 : f32 to vector<16x1xf32>
    %6 = arith.divf %4, %5 : vector<16x1xf32>
    %7 = vector.broadcast %6 : vector<16x1xf32> to vector<16x32xf32>
    %8 = arith.subf %0, %7 : vector<16x32xf32>
    %9 = arith.mulf %8, %8 : vector<16x32xf32>
    %cst_6 = arith.constant dense<0.000000e+00> : vector<16xf32>
    %10 = vector.multi_reduction <add>, %9, %cst_6 [1] : vector<16x32xf32> to vector<16xf32>
    %11 = vector.shape_cast %10 : vector<16xf32> to vector<16x1xf32>
    %cst_7 = arith.constant 3.200000e+01 : f32
    %12 = vector.broadcast %cst_7 : f32 to vector<16x1xf32>
    %13 = arith.divf %11, %12 : vector<16x1xf32>
    %cst_8 = arith.constant 9.99999996E-13 : f32
    %14 = vector.broadcast %cst_8 : f32 to vector<16x1xf32>
    %15 = arith.addf %13, %14 : vector<16x1xf32>
    %16 = math.rsqrt %15 : vector<16x1xf32>
    %17 = vector.broadcast %16 : vector<16x1xf32> to vector<16x32xf32>
    %18 = arith.mulf %8, %17 : vector<16x32xf32>
    %19 = vector.broadcast %1 : vector<1x32xf32> to vector<16x32xf32>
    %20 = arith.mulf %18, %19 : vector<16x32xf32>
    %21 = vector.broadcast %2 : vector<1x32xf32> to vector<16x32xf32>
    %22 = arith.addf %20, %21 : vector<16x32xf32>
    %c0_9 = arith.constant 0 : index
    %c0_10 = arith.constant 0 : index
    %23 = vector.load %arg1[%c0_9, %c0_10] : memref<2x8xf32, #tpu.memory_space<vmem>>, vector<2x8xf32>
    %c0_11 = arith.constant 0 : index
    %c0_12 = arith.constant 0 : index
    %c0_13 = arith.constant 0 : index
    %24 = vector.load %arg4[%c0_11, %c0_12, %c0_13] : memref<2x32x96xf32, #tpu.memory_space<vmem>>, vector<1x32x96xf32>
    %25 = vector.shape_cast %24 : vector<1x32x96xf32> to vector<32x96xf32>
    %c0_14 = arith.constant 0 : index
    %c0_15 = arith.constant 0 : index
    %c0_16 = arith.constant 0 : index
    %26 = vector.load %arg5[%c0_14, %c0_15, %c0_16] : memref<2x1x96xf32, #tpu.memory_space<vmem>>, vector<1x1x96xf32>
    %27 = vector.shape_cast %26 : vector<1x1x96xf32> to vector<1x96xf32>
    %c0_17 = arith.constant 0 : index
    %c0_18 = arith.constant 0 : index
    %c0_19 = arith.constant 0 : index
    %28 = vector.load %arg6[%c0_17, %c0_18, %c0_19] : memref<2x32x32xf32, #tpu.memory_space<vmem>>, vector<1x32x32xf32>
    %29 = vector.shape_cast %28 : vector<1x32x32xf32> to vector<32x32xf32>
    %c0_20 = arith.constant 0 : index
    %c0_21 = arith.constant 0 : index
    %c0_22 = arith.constant 0 : index
    %30 = vector.load %arg7[%c0_20, %c0_21, %c0_22] : memref<2x1x32xf32, #tpu.memory_space<vmem>>, vector<1x1x32xf32>
    %31 = vector.shape_cast %30 : vector<1x1x32xf32> to vector<1x32xf32>
    %c0_23 = arith.constant 0 : index
    %c0_24 = arith.constant 0 : index
    %c0_25 = arith.constant 0 : index
    %32 = vector.load %arg10[%c0_23, %c0_24, %c0_25] : memref<2x32x64xf32, #tpu.memory_space<vmem>>, vector<1x32x64xf32>
    %33 = vector.shape_cast %32 : vector<1x32x64xf32> to vector<32x64xf32>
    %c0_26 = arith.constant 0 : index
    %c0_27 = arith.constant 0 : index
    %c0_28 = arith.constant 0 : index
    %34 = vector.load %arg11[%c0_26, %c0_27, %c0_28] : memref<2x1x64xf32, #tpu.memory_space<vmem>>, vector<1x1x64xf32>
    %35 = vector.shape_cast %34 : vector<1x1x64xf32> to vector<1x64xf32>
    %c0_29 = arith.constant 0 : index
    %c0_30 = arith.constant 0 : index
    %c0_31 = arith.constant 0 : index
    %36 = vector.load %arg12[%c0_29, %c0_30, %c0_31] : memref<2x64x32xf32, #tpu.memory_space<vmem>>, vector<1x64x32xf32>
    %37 = vector.shape_cast %36 : vector<1x64x32xf32> to vector<64x32xf32>
    %c0_32 = arith.constant 0 : index
    %c0_33 = arith.constant 0 : index
    %c0_34 = arith.constant 0 : index
    %38 = vector.load %arg13[%c0_32, %c0_33, %c0_34] : memref<2x1x32xf32, #tpu.memory_space<vmem>>, vector<1x1x32xf32>
    %39 = vector.shape_cast %38 : vector<1x1x32xf32> to vector<1x32xf32>
    %cst_35 = arith.constant dense<0.000000e+00> : vector<16x96xf32>
    %40 = tpu.matmul %22, %25, %cst_35 {dimension_numbers = #tpu.dot_dimension_numbers<[1], [0], [0], [1], [0, 0, 1, 1], [], []>} : vector<16x32xf32>, vector<32x96xf32>, vector<16x96xf32> -> vector<16x96xf32>
    %41 = vector.broadcast %27 : vector<1x96xf32> to vector<16x96xf32>
    %42 = arith.addf %40, %41 : vector<16x96xf32>
    %43 = vector.extract_strided_slice %23 {offsets = [0, 0], sizes = [1, 8], strides = [1, 1]} : vector<2x8xf32> to vector<1x8xf32>
    %44 = vector.extract_strided_slice %42 {offsets = [0, 0], sizes = [8, 16], strides = [1, 1]} : vector<16x96xf32> to vector<8x16xf32>
    %45 = vector.extract_strided_slice %42 {offsets = [0, 32], sizes = [8, 16], strides = [1, 1]} : vector<16x96xf32> to vector<8x16xf32>
    %46 = vector.extract_strided_slice %42 {offsets = [0, 64], sizes = [8, 16], strides = [1, 1]} : vector<16x96xf32> to vector<8x16xf32>
    %cst_36 = arith.constant dense<0.000000e+00> : vector<8x8xf32>
    %47 = tpu.matmul %44, %45, %cst_36 {dimension_numbers = #tpu.dot_dimension_numbers<[1], [1], [0], [0], [0, 0, 1, 0], [], []>} : vector<8x16xf32>, vector<8x16xf32>, vector<8x8xf32> -> vector<8x8xf32>
    %cst_37 = arith.constant 2.500000e-01 : f32
    %48 = vector.broadcast %cst_37 : f32 to vector<8x8xf32>
    %49 = arith.mulf %47, %48 : vector<8x8xf32>
    %50 = vector.broadcast %43 : vector<1x8xf32> to vector<8x8xf32>
    %51 = arith.addf %49, %50 : vector<8x8xf32>
    %cst_38 = arith.constant dense<0xFF800000> : vector<8xf32>
    %52 = vector.multi_reduction <maximumf>, %51, %cst_38 [1] : vector<8x8xf32> to vector<8xf32>
    %53 = vector.shape_cast %52 : vector<8xf32> to vector<8x1xf32>
    %54 = vector.broadcast %53 : vector<8x1xf32> to vector<8x8xf32>
    %55 = arith.subf %51, %54 : vector<8x8xf32>
    %56 = math.exp %55 : vector<8x8xf32>
    %cst_39 = arith.constant dense<0.000000e+00> : vector<8xf32>
    %57 = vector.multi_reduction <add>, %56, %cst_39 [1] : vector<8x8xf32> to vector<8xf32>
    %58 = vector.shape_cast %57 : vector<8xf32> to vector<8x1xf32>
    %59 = tpu.reciprocal %58 {approx = true} : vector<8x1xf32> -> vector<8x1xf32>
    %60 = vector.broadcast %59 : vector<8x1xf32> to vector<8x8xf32>
    %61 = arith.mulf %56, %60 : vector<8x8xf32>
    %cst_40 = arith.constant dense<0.000000e+00> : vector<8x16xf32>
    %62 = tpu.matmul %61, %46, %cst_40 {dimension_numbers = #tpu.dot_dimension_numbers<[1], [0], [0], [1], [0, 0, 1, 1], [], []>} : vector<8x8xf32>, vector<8x16xf32>, vector<8x16xf32> -> vector<8x16xf32>
    %63 = vector.extract_strided_slice %42 {offsets = [0, 16], sizes = [8, 16], strides = [1, 1]} : vector<16x96xf32> to vector<8x16xf32>
    %64 = vector.extract_strided_slice %42 {offsets = [0, 48], sizes = [8, 16], strides = [1, 1]} : vector<16x96xf32> to vector<8x16xf32>
    %65 = vector.extract_strided_slice %42 {offsets = [0, 80], sizes = [8, 16], strides = [1, 1]} : vector<16x96xf32> to vector<8x16xf32>
    %cst_41 = arith.constant dense<0.000000e+00> : vector<8x8xf32>
    %66 = tpu.matmul %63, %64, %cst_41 {dimension_numbers = #tpu.dot_dimension_numbers<[1], [1], [0], [0], [0, 0, 1, 0], [], []>} : vector<8x16xf32>, vector<8x16xf32>, vector<8x8xf32> -> vector<8x8xf32>
    %cst_42 = arith.constant 2.500000e-01 : f32
    %67 = vector.broadcast %cst_42 : f32 to vector<8x8xf32>
    %68 = arith.mulf %66, %67 : vector<8x8xf32>
    %69 = vector.broadcast %43 : vector<1x8xf32> to vector<8x8xf32>
    %70 = arith.addf %68, %69 : vector<8x8xf32>
    %cst_43 = arith.constant dense<0xFF800000> : vector<8xf32>
    %71 = vector.multi_reduction <maximumf>, %70, %cst_43 [1] : vector<8x8xf32> to vector<8xf32>
    %72 = vector.shape_cast %71 : vector<8xf32> to vector<8x1xf32>
    %73 = vector.broadcast %72 : vector<8x1xf32> to vector<8x8xf32>
    %74 = arith.subf %70, %73 : vector<8x8xf32>
    %75 = math.exp %74 : vector<8x8xf32>
    %cst_44 = arith.constant dense<0.000000e+00> : vector<8xf32>
    %76 = vector.multi_reduction <add>, %75, %cst_44 [1] : vector<8x8xf32> to vector<8xf32>
    %77 = vector.shape_cast %76 : vector<8xf32> to vector<8x1xf32>
    %78 = tpu.reciprocal %77 {approx = true} : vector<8x1xf32> -> vector<8x1xf32>
    %79 = vector.broadcast %78 : vector<8x1xf32> to vector<8x8xf32>
    %80 = arith.mulf %75, %79 : vector<8x8xf32>
    %cst_45 = arith.constant dense<0.000000e+00> : vector<8x16xf32>
    %81 = tpu.matmul %80, %65, %cst_45 {dimension_numbers = #tpu.dot_dimension_numbers<[1], [0], [0], [1], [0, 0, 1, 1], [], []>} : vector<8x8xf32>, vector<8x16xf32>, vector<8x16xf32> -> vector<8x16xf32>
    %82 = tpu.concatenate %62, %81 in 1 : vector<8x16xf32>, vector<8x16xf32> -> vector<8x32xf32>
    %83 = vector.extract_strided_slice %23 {offsets = [1, 0], sizes = [1, 8], strides = [1, 1]} : vector<2x8xf32> to vector<1x8xf32>
    %84 = vector.extract_strided_slice %42 {offsets = [8, 0], sizes = [8, 16], strides = [1, 1]} : vector<16x96xf32> to vector<8x16xf32>
    %85 = vector.extract_strided_slice %42 {offsets = [8, 32], sizes = [8, 16], strides = [1, 1]} : vector<16x96xf32> to vector<8x16xf32>
    %86 = vector.extract_strided_slice %42 {offsets = [8, 64], sizes = [8, 16], strides = [1, 1]} : vector<16x96xf32> to vector<8x16xf32>
    %cst_46 = arith.constant dense<0.000000e+00> : vector<8x8xf32>
    %87 = tpu.matmul %84, %85, %cst_46 {dimension_numbers = #tpu.dot_dimension_numbers<[1], [1], [0], [0], [0, 0, 1, 0], [], []>} : vector<8x16xf32>, vector<8x16xf32>, vector<8x8xf32> -> vector<8x8xf32>
    %cst_47 = arith.constant 2.500000e-01 : f32
    %88 = vector.broadcast %cst_47 : f32 to vector<8x8xf32>
    %89 = arith.mulf %87, %88 : vector<8x8xf32>
    %90 = vector.broadcast %83 : vector<1x8xf32> to vector<8x8xf32>
    %91 = arith.addf %89, %90 : vector<8x8xf32>
    %cst_48 = arith.constant dense<0xFF800000> : vector<8xf32>
    %92 = vector.multi_reduction <maximumf>, %91, %cst_48 [1] : vector<8x8xf32> to vector<8xf32>
    %93 = vector.shape_cast %92 : vector<8xf32> to vector<8x1xf32>
    %94 = vector.broadcast %93 : vector<8x1xf32> to vector<8x8xf32>
    %95 = arith.subf %91, %94 : vector<8x8xf32>
    %96 = math.exp %95 : vector<8x8xf32>
    %cst_49 = arith.constant dense<0.000000e+00> : vector<8xf32>
    %97 = vector.multi_reduction <add>, %96, %cst_49 [1] : vector<8x8xf32> to vector<8xf32>
    %98 = vector.shape_cast %97 : vector<8xf32> to vector<8x1xf32>
    %99 = tpu.reciprocal %98 {approx = true} : vector<8x1xf32> -> vector<8x1xf32>
    %100 = vector.broadcast %99 : vector<8x1xf32> to vector<8x8xf32>
    %101 = arith.mulf %96, %100 : vector<8x8xf32>
    %cst_50 = arith.constant dense<0.000000e+00> : vector<8x16xf32>
    %102 = tpu.matmul %101, %86, %cst_50 {dimension_numbers = #tpu.dot_dimension_numbers<[1], [0], [0], [1], [0, 0, 1, 1], [], []>} : vector<8x8xf32>, vector<8x16xf32>, vector<8x16xf32> -> vector<8x16xf32>
    %103 = vector.extract_strided_slice %42 {offsets = [8, 16], sizes = [8, 16], strides = [1, 1]} : vector<16x96xf32> to vector<8x16xf32>
    %104 = vector.extract_strided_slice %42 {offsets = [8, 48], sizes = [8, 16], strides = [1, 1]} : vector<16x96xf32> to vector<8x16xf32>
    %105 = vector.extract_strided_slice %42 {offsets = [8, 80], sizes = [8, 16], strides = [1, 1]} : vector<16x96xf32> to vector<8x16xf32>
    %cst_51 = arith.constant dense<0.000000e+00> : vector<8x8xf32>
    %106 = tpu.matmul %103, %104, %cst_51 {dimension_numbers = #tpu.dot_dimension_numbers<[1], [1], [0], [0], [0, 0, 1, 0], [], []>} : vector<8x16xf32>, vector<8x16xf32>, vector<8x8xf32> -> vector<8x8xf32>
    %cst_52 = arith.constant 2.500000e-01 : f32
    %107 = vector.broadcast %cst_52 : f32 to vector<8x8xf32>
    %108 = arith.mulf %106, %107 : vector<8x8xf32>
    %109 = vector.broadcast %83 : vector<1x8xf32> to vector<8x8xf32>
    %110 = arith.addf %108, %109 : vector<8x8xf32>
    %cst_53 = arith.constant dense<0xFF800000> : vector<8xf32>
    %111 = vector.multi_reduction <maximumf>, %110, %cst_53 [1] : vector<8x8xf32> to vector<8xf32>
    %112 = vector.shape_cast %111 : vector<8xf32> to vector<8x1xf32>
    %113 = vector.broadcast %112 : vector<8x1xf32> to vector<8x8xf32>
    %114 = arith.subf %110, %113 : vector<8x8xf32>
    %115 = math.exp %114 : vector<8x8xf32>
    %cst_54 = arith.constant dense<0.000000e+00> : vector<8xf32>
    %116 = vector.multi_reduction <add>, %115, %cst_54 [1] : vector<8x8xf32> to vector<8xf32>
    %117 = vector.shape_cast %116 : vector<8xf32> to vector<8x1xf32>
    %118 = tpu.reciprocal %117 {approx = true} : vector<8x1xf32> -> vector<8x1xf32>
    %119 = vector.broadcast %118 : vector<8x1xf32> to vector<8x8xf32>
    %120 = arith.mulf %115, %119 : vector<8x8xf32>
    %cst_55 = arith.constant dense<0.000000e+00> : vector<8x16xf32>
    %121 = tpu.matmul %120, %105, %cst_55 {dimension_numbers = #tpu.dot_dimension_numbers<[1], [0], [0], [1], [0, 0, 1, 1], [], []>} : vector<8x8xf32>, vector<8x16xf32>, vector<8x16xf32> -> vector<8x16xf32>
    %122 = tpu.concatenate %102, %121 in 1 : vector<8x16xf32>, vector<8x16xf32> -> vector<8x32xf32>
    %123 = tpu.concatenate %82, %122 in 0 : vector<8x32xf32>, vector<8x32xf32> -> vector<16x32xf32>
    %cst_56 = arith.constant dense<0.000000e+00> : vector<16x32xf32>
    %124 = tpu.matmul %123, %29, %cst_56 {dimension_numbers = #tpu.dot_dimension_numbers<[1], [0], [0], [1], [0, 0, 1, 1], [], []>} : vector<16x32xf32>, vector<32x32xf32>, vector<16x32xf32> -> vector<16x32xf32>
    %125 = vector.broadcast %31 : vector<1x32xf32> to vector<16x32xf32>
    %126 = arith.addf %124, %125 : vector<16x32xf32>
    %127 = arith.addf %22, %126 : vector<16x32xf32>
    %c0_57 = arith.constant 0 : index
    %c0_58 = arith.constant 0 : index
    %c0_59 = arith.constant 0 : index
    %128 = vector.load %arg8[%c0_57, %c0_58, %c0_59] : memref<2x1x32xf32, #tpu.memory_space<vmem>>, vector<1x1x32xf32>
    %129 = vector.shape_cast %128 : vector<1x1x32xf32> to vector<1x32xf32>
    %c0_60 = arith.constant 0 : index
    %c0_61 = arith.constant 0 : index
    %c0_62 = arith.constant 0 : index
    %130 = vector.load %arg9[%c0_60, %c0_61, %c0_62] : memref<2x1x32xf32, #tpu.memory_space<vmem>>, vector<1x1x32xf32>
    %131 = vector.shape_cast %130 : vector<1x1x32xf32> to vector<1x32xf32>
    %cst_63 = arith.constant dense<0.000000e+00> : vector<16xf32>
    %132 = vector.multi_reduction <add>, %127, %cst_63 [1] : vector<16x32xf32> to vector<16xf32>
    %133 = vector.shape_cast %132 : vector<16xf32> to vector<16x1xf32>
    %cst_64 = arith.constant 3.200000e+01 : f32
    %134 = vector.broadcast %cst_64 : f32 to vector<16x1xf32>
    %135 = arith.divf %133, %134 : vector<16x1xf32>
    %136 = vector.broadcast %135 : vector<16x1xf32> to vector<16x32xf32>
    %137 = arith.subf %127, %136 : vector<16x32xf32>
    %138 = arith.mulf %137, %137 : vector<16x32xf32>
    %cst_65 = arith.constant dense<0.000000e+00> : vector<16xf32>
    %139 = vector.multi_reduction <add>, %138, %cst_65 [1] : vector<16x32xf32> to vector<16xf32>
    %140 = vector.shape_cast %139 : vector<16xf32> to vector<16x1xf32>
    %cst_66 = arith.constant 3.200000e+01 : f32
    %141 = vector.broadcast %cst_66 : f32 to vector<16x1xf32>
    %142 = arith.divf %140, %141 : vector<16x1xf32>
    %cst_67 = arith.constant 9.99999996E-13 : f32
    %143 = vector.broadcast %cst_67 : f32 to vector<16x1xf32>
    %144 = arith.addf %142, %143 : vector<16x1xf32>
    %145 = math.rsqrt %144 : vector<16x1xf32>
    %146 = vector.broadcast %145 : vector<16x1xf32> to vector<16x32xf32>
    %147 = arith.mulf %137, %146 : vector<16x32xf32>
    %148 = vector.broadcast %129 : vector<1x32xf32> to vector<16x32xf32>
    %149 = arith.mulf %147, %148 : vector<16x32xf32>
    %150 = vector.broadcast %131 : vector<1x32xf32> to vector<16x32xf32>
    %151 = arith.addf %149, %150 : vector<16x32xf32>
    %cst_68 = arith.constant dense<0.000000e+00> : vector<16x64xf32>
    %152 = tpu.matmul %151, %33, %cst_68 {dimension_numbers = #tpu.dot_dimension_numbers<[1], [0], [0], [1], [0, 0, 1, 1], [], []>} : vector<16x32xf32>, vector<32x64xf32>, vector<16x64xf32> -> vector<16x64xf32>
    %153 = vector.broadcast %35 : vector<1x64xf32> to vector<16x64xf32>
    %154 = arith.addf %152, %153 : vector<16x64xf32>
    %cst_69 = arith.constant 5.000000e-01 : f32
    %155 = vector.broadcast %cst_69 : f32 to vector<16x64xf32>
    %156 = arith.mulf %155, %154 : vector<16x64xf32>
    %cst_70 = arith.constant 4.471500e-02 : f32
    %157 = vector.broadcast %cst_70 : f32 to vector<16x64xf32>
    %158 = arith.mulf %157, %154 : vector<16x64xf32>
    %159 = arith.mulf %158, %154 : vector<16x64xf32>
    %160 = arith.mulf %159, %154 : vector<16x64xf32>
    %161 = arith.addf %154, %160 : vector<16x64xf32>
    %cst_71 = arith.constant 0.797884583 : f32
    %162 = vector.broadcast %cst_71 : f32 to vector<16x64xf32>
    %163 = arith.mulf %162, %161 : vector<16x64xf32>
    %164 = math.tanh %163 : vector<16x64xf32>
    %cst_72 = arith.constant 1.000000e+00 : f32
    %165 = vector.broadcast %cst_72 : f32 to vector<16x64xf32>
    %166 = arith.addf %165, %164 : vector<16x64xf32>
    %167 = arith.mulf %156, %166 : vector<16x64xf32>
    %cst_73 = arith.constant dense<0.000000e+00> : vector<16x32xf32>
    %168 = tpu.matmul %167, %37, %cst_73 {dimension_numbers = #tpu.dot_dimension_numbers<[1], [0], [0], [1], [0, 0, 1, 1], [], []>} : vector<16x64xf32>, vector<64x32xf32>, vector<16x32xf32> -> vector<16x32xf32>
    %169 = vector.broadcast %39 : vector<1x32xf32> to vector<16x32xf32>
    %170 = arith.addf %168, %169 : vector<16x32xf32>
    %171 = arith.addf %151, %170 : vector<16x32xf32>
    %c0_74 = arith.constant 0 : index
    %c0_75 = arith.constant 0 : index
    %c0_76 = arith.constant 0 : index
    %172 = vector.load %arg14[%c0_74, %c0_75, %c0_76] : memref<2x1x32xf32, #tpu.memory_space<vmem>>, vector<1x1x32xf32>
    %173 = vector.shape_cast %172 : vector<1x1x32xf32> to vector<1x32xf32>
    %c0_77 = arith.constant 0 : index
    %c0_78 = arith.constant 0 : index
    %c0_79 = arith.constant 0 : index
    %174 = vector.load %arg15[%c0_77, %c0_78, %c0_79] : memref<2x1x32xf32, #tpu.memory_space<vmem>>, vector<1x1x32xf32>
    %175 = vector.shape_cast %174 : vector<1x1x32xf32> to vector<1x32xf32>
    %cst_80 = arith.constant dense<0.000000e+00> : vector<16xf32>
    %176 = vector.multi_reduction <add>, %171, %cst_80 [1] : vector<16x32xf32> to vector<16xf32>
    %177 = vector.shape_cast %176 : vector<16xf32> to vector<16x1xf32>
    %cst_81 = arith.constant 3.200000e+01 : f32
    %178 = vector.broadcast %cst_81 : f32 to vector<16x1xf32>
    %179 = arith.divf %177, %178 : vector<16x1xf32>
    %180 = vector.broadcast %179 : vector<16x1xf32> to vector<16x32xf32>
    %181 = arith.subf %171, %180 : vector<16x32xf32>
    %182 = arith.mulf %181, %181 : vector<16x32xf32>
    %cst_82 = arith.constant dense<0.000000e+00> : vector<16xf32>
    %183 = vector.multi_reduction <add>, %182, %cst_82 [1] : vector<16x32xf32> to vector<16xf32>
    %184 = vector.shape_cast %183 : vector<16xf32> to vector<16x1xf32>
    %cst_83 = arith.constant 3.200000e+01 : f32
    %185 = vector.broadcast %cst_83 : f32 to vector<16x1xf32>
    %186 = arith.divf %184, %185 : vector<16x1xf32>
    %cst_84 = arith.constant 9.99999996E-13 : f32
    %187 = vector.broadcast %cst_84 : f32 to vector<16x1xf32>
    %188 = arith.addf %186, %187 : vector<16x1xf32>
    %189 = math.rsqrt %188 : vector<16x1xf32>
    %190 = vector.broadcast %189 : vector<16x1xf32> to vector<16x32xf32>
    %191 = arith.mulf %181, %190 : vector<16x32xf32>
    %192 = vector.broadcast %173 : vector<1x32xf32> to vector<16x32xf32>
    %193 = arith.mulf %191, %192 : vector<16x32xf32>
    %194 = vector.broadcast %175 : vector<1x32xf32> to vector<16x32xf32>
    %195 = arith.addf %193, %194 : vector<16x32xf32>
    %c1 = arith.constant 1 : index
    %c0_85 = arith.constant 0 : index
    %c0_86 = arith.constant 0 : index
    %196 = vector.load %arg4[%c1, %c0_85, %c0_86] : memref<2x32x96xf32, #tpu.memory_space<vmem>>, vector<1x32x96xf32>
    %197 = vector.shape_cast %196 : vector<1x32x96xf32> to vector<32x96xf32>
    %c1_87 = arith.constant 1 : index
    %c0_88 = arith.constant 0 : index
    %c0_89 = arith.constant 0 : index
    %198 = vector.load %arg5[%c1_87, %c0_88, %c0_89] : memref<2x1x96xf32, #tpu.memory_space<vmem>>, vector<1x1x96xf32>
    %199 = vector.shape_cast %198 : vector<1x1x96xf32> to vector<1x96xf32>
    %c1_90 = arith.constant 1 : index
    %c0_91 = arith.constant 0 : index
    %c0_92 = arith.constant 0 : index
    %200 = vector.load %arg6[%c1_90, %c0_91, %c0_92] : memref<2x32x32xf32, #tpu.memory_space<vmem>>, vector<1x32x32xf32>
    %201 = vector.shape_cast %200 : vector<1x32x32xf32> to vector<32x32xf32>
    %c1_93 = arith.constant 1 : index
    %c0_94 = arith.constant 0 : index
    %c0_95 = arith.constant 0 : index
    %202 = vector.load %arg7[%c1_93, %c0_94, %c0_95] : memref<2x1x32xf32, #tpu.memory_space<vmem>>, vector<1x1x32xf32>
    %203 = vector.shape_cast %202 : vector<1x1x32xf32> to vector<1x32xf32>
    %c1_96 = arith.constant 1 : index
    %c0_97 = arith.constant 0 : index
    %c0_98 = arith.constant 0 : index
    %204 = vector.load %arg10[%c1_96, %c0_97, %c0_98] : memref<2x32x64xf32, #tpu.memory_space<vmem>>, vector<1x32x64xf32>
    %205 = vector.shape_cast %204 : vector<1x32x64xf32> to vector<32x64xf32>
    %c1_99 = arith.constant 1 : index
    %c0_100 = arith.constant 0 : index
    %c0_101 = arith.constant 0 : index
    %206 = vector.load %arg11[%c1_99, %c0_100, %c0_101] : memref<2x1x64xf32, #tpu.memory_space<vmem>>, vector<1x1x64xf32>
    %207 = vector.shape_cast %206 : vector<1x1x64xf32> to vector<1x64xf32>
    %c1_102 = arith.constant 1 : index
    %c0_103 = arith.constant 0 : index
    %c0_104 = arith.constant 0 : index
    %208 = vector.load %arg12[%c1_102, %c0_103, %c0_104] : memref<2x64x32xf32, #tpu.memory_space<vmem>>, vector<1x64x32xf32>
    %209 = vector.shape_cast %208 : vector<1x64x32xf32> to vector<64x32xf32>
    %c1_105 = arith.constant 1 : index
    %c0_106 = arith.constant 0 : index
    %c0_107 = arith.constant 0 : index
    %210 = vector.load %arg13[%c1_105, %c0_106, %c0_107] : memref<2x1x32xf32, #tpu.memory_space<vmem>>, vector<1x1x32xf32>
    %211 = vector.shape_cast %210 : vector<1x1x32xf32> to vector<1x32xf32>
    %cst_108 = arith.constant dense<0.000000e+00> : vector<16x96xf32>
    %212 = tpu.matmul %195, %197, %cst_108 {dimension_numbers = #tpu.dot_dimension_numbers<[1], [0], [0], [1], [0, 0, 1, 1], [], []>} : vector<16x32xf32>, vector<32x96xf32>, vector<16x96xf32> -> vector<16x96xf32>
    %213 = vector.broadcast %199 : vector<1x96xf32> to vector<16x96xf32>
    %214 = arith.addf %212, %213 : vector<16x96xf32>
    %215 = vector.extract_strided_slice %23 {offsets = [0, 0], sizes = [1, 8], strides = [1, 1]} : vector<2x8xf32> to vector<1x8xf32>
    %216 = vector.extract_strided_slice %214 {offsets = [0, 0], sizes = [8, 16], strides = [1, 1]} : vector<16x96xf32> to vector<8x16xf32>
    %217 = vector.extract_strided_slice %214 {offsets = [0, 32], sizes = [8, 16], strides = [1, 1]} : vector<16x96xf32> to vector<8x16xf32>
    %218 = vector.extract_strided_slice %214 {offsets = [0, 64], sizes = [8, 16], strides = [1, 1]} : vector<16x96xf32> to vector<8x16xf32>
    %cst_109 = arith.constant dense<0.000000e+00> : vector<8x8xf32>
    %219 = tpu.matmul %216, %217, %cst_109 {dimension_numbers = #tpu.dot_dimension_numbers<[1], [1], [0], [0], [0, 0, 1, 0], [], []>} : vector<8x16xf32>, vector<8x16xf32>, vector<8x8xf32> -> vector<8x8xf32>
    %cst_110 = arith.constant 2.500000e-01 : f32
    %220 = vector.broadcast %cst_110 : f32 to vector<8x8xf32>
    %221 = arith.mulf %219, %220 : vector<8x8xf32>
    %222 = vector.broadcast %215 : vector<1x8xf32> to vector<8x8xf32>
    %223 = arith.addf %221, %222 : vector<8x8xf32>
    %cst_111 = arith.constant dense<0xFF800000> : vector<8xf32>
    %224 = vector.multi_reduction <maximumf>, %223, %cst_111 [1] : vector<8x8xf32> to vector<8xf32>
    %225 = vector.shape_cast %224 : vector<8xf32> to vector<8x1xf32>
    %226 = vector.broadcast %225 : vector<8x1xf32> to vector<8x8xf32>
    %227 = arith.subf %223, %226 : vector<8x8xf32>
    %228 = math.exp %227 : vector<8x8xf32>
    %cst_112 = arith.constant dense<0.000000e+00> : vector<8xf32>
    %229 = vector.multi_reduction <add>, %228, %cst_112 [1] : vector<8x8xf32> to vector<8xf32>
    %230 = vector.shape_cast %229 : vector<8xf32> to vector<8x1xf32>
    %231 = tpu.reciprocal %230 {approx = true} : vector<8x1xf32> -> vector<8x1xf32>
    %232 = vector.broadcast %231 : vector<8x1xf32> to vector<8x8xf32>
    %233 = arith.mulf %228, %232 : vector<8x8xf32>
    %cst_113 = arith.constant dense<0.000000e+00> : vector<8x16xf32>
    %234 = tpu.matmul %233, %218, %cst_113 {dimension_numbers = #tpu.dot_dimension_numbers<[1], [0], [0], [1], [0, 0, 1, 1], [], []>} : vector<8x8xf32>, vector<8x16xf32>, vector<8x16xf32> -> vector<8x16xf32>
    %235 = vector.extract_strided_slice %214 {offsets = [0, 16], sizes = [8, 16], strides = [1, 1]} : vector<16x96xf32> to vector<8x16xf32>
    %236 = vector.extract_strided_slice %214 {offsets = [0, 48], sizes = [8, 16], strides = [1, 1]} : vector<16x96xf32> to vector<8x16xf32>
    %237 = vector.extract_strided_slice %214 {offsets = [0, 80], sizes = [8, 16], strides = [1, 1]} : vector<16x96xf32> to vector<8x16xf32>
    %cst_114 = arith.constant dense<0.000000e+00> : vector<8x8xf32>
    %238 = tpu.matmul %235, %236, %cst_114 {dimension_numbers = #tpu.dot_dimension_numbers<[1], [1], [0], [0], [0, 0, 1, 0], [], []>} : vector<8x16xf32>, vector<8x16xf32>, vector<8x8xf32> -> vector<8x8xf32>
    %cst_115 = arith.constant 2.500000e-01 : f32
    %239 = vector.broadcast %cst_115 : f32 to vector<8x8xf32>
    %240 = arith.mulf %238, %239 : vector<8x8xf32>
    %241 = vector.broadcast %215 : vector<1x8xf32> to vector<8x8xf32>
    %242 = arith.addf %240, %241 : vector<8x8xf32>
    %cst_116 = arith.constant dense<0xFF800000> : vector<8xf32>
    %243 = vector.multi_reduction <maximumf>, %242, %cst_116 [1] : vector<8x8xf32> to vector<8xf32>
    %244 = vector.shape_cast %243 : vector<8xf32> to vector<8x1xf32>
    %245 = vector.broadcast %244 : vector<8x1xf32> to vector<8x8xf32>
    %246 = arith.subf %242, %245 : vector<8x8xf32>
    %247 = math.exp %246 : vector<8x8xf32>
    %cst_117 = arith.constant dense<0.000000e+00> : vector<8xf32>
    %248 = vector.multi_reduction <add>, %247, %cst_117 [1] : vector<8x8xf32> to vector<8xf32>
    %249 = vector.shape_cast %248 : vector<8xf32> to vector<8x1xf32>
    %250 = tpu.reciprocal %249 {approx = true} : vector<8x1xf32> -> vector<8x1xf32>
    %251 = vector.broadcast %250 : vector<8x1xf32> to vector<8x8xf32>
    %252 = arith.mulf %247, %251 : vector<8x8xf32>
    %cst_118 = arith.constant dense<0.000000e+00> : vector<8x16xf32>
    %253 = tpu.matmul %252, %237, %cst_118 {dimension_numbers = #tpu.dot_dimension_numbers<[1], [0], [0], [1], [0, 0, 1, 1], [], []>} : vector<8x8xf32>, vector<8x16xf32>, vector<8x16xf32> -> vector<8x16xf32>
    %254 = tpu.concatenate %234, %253 in 1 : vector<8x16xf32>, vector<8x16xf32> -> vector<8x32xf32>
    %255 = vector.extract_strided_slice %23 {offsets = [1, 0], sizes = [1, 8], strides = [1, 1]} : vector<2x8xf32> to vector<1x8xf32>
    %256 = vector.extract_strided_slice %214 {offsets = [8, 0], sizes = [8, 16], strides = [1, 1]} : vector<16x96xf32> to vector<8x16xf32>
    %257 = vector.extract_strided_slice %214 {offsets = [8, 32], sizes = [8, 16], strides = [1, 1]} : vector<16x96xf32> to vector<8x16xf32>
    %258 = vector.extract_strided_slice %214 {offsets = [8, 64], sizes = [8, 16], strides = [1, 1]} : vector<16x96xf32> to vector<8x16xf32>
    %cst_119 = arith.constant dense<0.000000e+00> : vector<8x8xf32>
    %259 = tpu.matmul %256, %257, %cst_119 {dimension_numbers = #tpu.dot_dimension_numbers<[1], [1], [0], [0], [0, 0, 1, 0], [], []>} : vector<8x16xf32>, vector<8x16xf32>, vector<8x8xf32> -> vector<8x8xf32>
    %cst_120 = arith.constant 2.500000e-01 : f32
    %260 = vector.broadcast %cst_120 : f32 to vector<8x8xf32>
    %261 = arith.mulf %259, %260 : vector<8x8xf32>
    %262 = vector.broadcast %255 : vector<1x8xf32> to vector<8x8xf32>
    %263 = arith.addf %261, %262 : vector<8x8xf32>
    %cst_121 = arith.constant dense<0xFF800000> : vector<8xf32>
    %264 = vector.multi_reduction <maximumf>, %263, %cst_121 [1] : vector<8x8xf32> to vector<8xf32>
    %265 = vector.shape_cast %264 : vector<8xf32> to vector<8x1xf32>
    %266 = vector.broadcast %265 : vector<8x1xf32> to vector<8x8xf32>
    %267 = arith.subf %263, %266 : vector<8x8xf32>
    %268 = math.exp %267 : vector<8x8xf32>
    %cst_122 = arith.constant dense<0.000000e+00> : vector<8xf32>
    %269 = vector.multi_reduction <add>, %268, %cst_122 [1] : vector<8x8xf32> to vector<8xf32>
    %270 = vector.shape_cast %269 : vector<8xf32> to vector<8x1xf32>
    %271 = tpu.reciprocal %270 {approx = true} : vector<8x1xf32> -> vector<8x1xf32>
    %272 = vector.broadcast %271 : vector<8x1xf32> to vector<8x8xf32>
    %273 = arith.mulf %268, %272 : vector<8x8xf32>
    %cst_123 = arith.constant dense<0.000000e+00> : vector<8x16xf32>
    %274 = tpu.matmul %273, %258, %cst_123 {dimension_numbers = #tpu.dot_dimension_numbers<[1], [0], [0], [1], [0, 0, 1, 1], [], []>} : vector<8x8xf32>, vector<8x16xf32>, vector<8x16xf32> -> vector<8x16xf32>
    %275 = vector.extract_strided_slice %214 {offsets = [8, 16], sizes = [8, 16], strides = [1, 1]} : vector<16x96xf32> to vector<8x16xf32>
    %276 = vector.extract_strided_slice %214 {offsets = [8, 48], sizes = [8, 16], strides = [1, 1]} : vector<16x96xf32> to vector<8x16xf32>
    %277 = vector.extract_strided_slice %214 {offsets = [8, 80], sizes = [8, 16], strides = [1, 1]} : vector<16x96xf32> to vector<8x16xf32>
    %cst_124 = arith.constant dense<0.000000e+00> : vector<8x8xf32>
    %278 = tpu.matmul %275, %276, %cst_124 {dimension_numbers = #tpu.dot_dimension_numbers<[1], [1], [0], [0], [0, 0, 1, 0], [], []>} : vector<8x16xf32>, vector<8x16xf32>, vector<8x8xf32> -> vector<8x8xf32>
    %cst_125 = arith.constant 2.500000e-01 : f32
    %279 = vector.broadcast %cst_125 : f32 to vector<8x8xf32>
    %280 = arith.mulf %278, %279 : vector<8x8xf32>
    %281 = vector.broadcast %255 : vector<1x8xf32> to vector<8x8xf32>
    %282 = arith.addf %280, %281 : vector<8x8xf32>
    %cst_126 = arith.constant dense<0xFF800000> : vector<8xf32>
    %283 = vector.multi_reduction <maximumf>, %282, %cst_126 [1] : vector<8x8xf32> to vector<8xf32>
    %284 = vector.shape_cast %283 : vector<8xf32> to vector<8x1xf32>
    %285 = vector.broadcast %284 : vector<8x1xf32> to vector<8x8xf32>
    %286 = arith.subf %282, %285 : vector<8x8xf32>
    %287 = math.exp %286 : vector<8x8xf32>
    %cst_127 = arith.constant dense<0.000000e+00> : vector<8xf32>
    %288 = vector.multi_reduction <add>, %287, %cst_127 [1] : vector<8x8xf32> to vector<8xf32>
    %289 = vector.shape_cast %288 : vector<8xf32> to vector<8x1xf32>
    %290 = tpu.reciprocal %289 {approx = true} : vector<8x1xf32> -> vector<8x1xf32>
    %291 = vector.broadcast %290 : vector<8x1xf32> to vector<8x8xf32>
    %292 = arith.mulf %287, %291 : vector<8x8xf32>
    %cst_128 = arith.constant dense<0.000000e+00> : vector<8x16xf32>
    %293 = tpu.matmul %292, %277, %cst_128 {dimension_numbers = #tpu.dot_dimension_numbers<[1], [0], [0], [1], [0, 0, 1, 1], [], []>} : vector<8x8xf32>, vector<8x16xf32>, vector<8x16xf32> -> vector<8x16xf32>
    %294 = tpu.concatenate %274, %293 in 1 : vector<8x16xf32>, vector<8x16xf32> -> vector<8x32xf32>
    %295 = tpu.concatenate %254, %294 in 0 : vector<8x32xf32>, vector<8x32xf32> -> vector<16x32xf32>
    %cst_129 = arith.constant dense<0.000000e+00> : vector<16x32xf32>
    %296 = tpu.matmul %295, %201, %cst_129 {dimension_numbers = #tpu.dot_dimension_numbers<[1], [0], [0], [1], [0, 0, 1, 1], [], []>} : vector<16x32xf32>, vector<32x32xf32>, vector<16x32xf32> -> vector<16x32xf32>
    %297 = vector.broadcast %203 : vector<1x32xf32> to vector<16x32xf32>
    %298 = arith.addf %296, %297 : vector<16x32xf32>
    %299 = arith.addf %195, %298 : vector<16x32xf32>
    %c1_130 = arith.constant 1 : index
    %c0_131 = arith.constant 0 : index
    %c0_132 = arith.constant 0 : index
    %300 = vector.load %arg8[%c1_130, %c0_131, %c0_132] : memref<2x1x32xf32, #tpu.memory_space<vmem>>, vector<1x1x32xf32>
    %301 = vector.shape_cast %300 : vector<1x1x32xf32> to vector<1x32xf32>
    %c1_133 = arith.constant 1 : index
    %c0_134 = arith.constant 0 : index
    %c0_135 = arith.constant 0 : index
    %302 = vector.load %arg9[%c1_133, %c0_134, %c0_135] : memref<2x1x32xf32, #tpu.memory_space<vmem>>, vector<1x1x32xf32>
    %303 = vector.shape_cast %302 : vector<1x1x32xf32> to vector<1x32xf32>
    %cst_136 = arith.constant dense<0.000000e+00> : vector<16xf32>
    %304 = vector.multi_reduction <add>, %299, %cst_136 [1] : vector<16x32xf32> to vector<16xf32>
    %305 = vector.shape_cast %304 : vector<16xf32> to vector<16x1xf32>
    %cst_137 = arith.constant 3.200000e+01 : f32
    %306 = vector.broadcast %cst_137 : f32 to vector<16x1xf32>
    %307 = arith.divf %305, %306 : vector<16x1xf32>
    %308 = vector.broadcast %307 : vector<16x1xf32> to vector<16x32xf32>
    %309 = arith.subf %299, %308 : vector<16x32xf32>
    %310 = arith.mulf %309, %309 : vector<16x32xf32>
    %cst_138 = arith.constant dense<0.000000e+00> : vector<16xf32>
    %311 = vector.multi_reduction <add>, %310, %cst_138 [1] : vector<16x32xf32> to vector<16xf32>
    %312 = vector.shape_cast %311 : vector<16xf32> to vector<16x1xf32>
    %cst_139 = arith.constant 3.200000e+01 : f32
    %313 = vector.broadcast %cst_139 : f32 to vector<16x1xf32>
    %314 = arith.divf %312, %313 : vector<16x1xf32>
    %cst_140 = arith.constant 9.99999996E-13 : f32
    %315 = vector.broadcast %cst_140 : f32 to vector<16x1xf32>
    %316 = arith.addf %314, %315 : vector<16x1xf32>
    %317 = math.rsqrt %316 : vector<16x1xf32>
    %318 = vector.broadcast %317 : vector<16x1xf32> to vector<16x32xf32>
    %319 = arith.mulf %309, %318 : vector<16x32xf32>
    %320 = vector.broadcast %301 : vector<1x32xf32> to vector<16x32xf32>
    %321 = arith.mulf %319, %320 : vector<16x32xf32>
    %322 = vector.broadcast %303 : vector<1x32xf32> to vector<16x32xf32>
    %323 = arith.addf %321, %322 : vector<16x32xf32>
    %cst_141 = arith.constant dense<0.000000e+00> : vector<16x64xf32>
    %324 = tpu.matmul %323, %205, %cst_141 {dimension_numbers = #tpu.dot_dimension_numbers<[1], [0], [0], [1], [0, 0, 1, 1], [], []>} : vector<16x32xf32>, vector<32x64xf32>, vector<16x64xf32> -> vector<16x64xf32>
    %325 = vector.broadcast %207 : vector<1x64xf32> to vector<16x64xf32>
    %326 = arith.addf %324, %325 : vector<16x64xf32>
    %cst_142 = arith.constant 5.000000e-01 : f32
    %327 = vector.broadcast %cst_142 : f32 to vector<16x64xf32>
    %328 = arith.mulf %327, %326 : vector<16x64xf32>
    %cst_143 = arith.constant 4.471500e-02 : f32
    %329 = vector.broadcast %cst_143 : f32 to vector<16x64xf32>
    %330 = arith.mulf %329, %326 : vector<16x64xf32>
    %331 = arith.mulf %330, %326 : vector<16x64xf32>
    %332 = arith.mulf %331, %326 : vector<16x64xf32>
    %333 = arith.addf %326, %332 : vector<16x64xf32>
    %cst_144 = arith.constant 0.797884583 : f32
    %334 = vector.broadcast %cst_144 : f32 to vector<16x64xf32>
    %335 = arith.mulf %334, %333 : vector<16x64xf32>
    %336 = math.tanh %335 : vector<16x64xf32>
    %cst_145 = arith.constant 1.000000e+00 : f32
    %337 = vector.broadcast %cst_145 : f32 to vector<16x64xf32>
    %338 = arith.addf %337, %336 : vector<16x64xf32>
    %339 = arith.mulf %328, %338 : vector<16x64xf32>
    %cst_146 = arith.constant dense<0.000000e+00> : vector<16x32xf32>
    %340 = tpu.matmul %339, %209, %cst_146 {dimension_numbers = #tpu.dot_dimension_numbers<[1], [0], [0], [1], [0, 0, 1, 1], [], []>} : vector<16x64xf32>, vector<64x32xf32>, vector<16x32xf32> -> vector<16x32xf32>
    %341 = vector.broadcast %211 : vector<1x32xf32> to vector<16x32xf32>
    %342 = arith.addf %340, %341 : vector<16x32xf32>
    %343 = arith.addf %323, %342 : vector<16x32xf32>
    %c1_147 = arith.constant 1 : index
    %c0_148 = arith.constant 0 : index
    %c0_149 = arith.constant 0 : index
    %344 = vector.load %arg14[%c1_147, %c0_148, %c0_149] : memref<2x1x32xf32, #tpu.memory_space<vmem>>, vector<1x1x32xf32>
    %345 = vector.shape_cast %344 : vector<1x1x32xf32> to vector<1x32xf32>
    %c1_150 = arith.constant 1 : index
    %c0_151 = arith.constant 0 : index
    %c0_152 = arith.constant 0 : index
    %346 = vector.load %arg15[%c1_150, %c0_151, %c0_152] : memref<2x1x32xf32, #tpu.memory_space<vmem>>, vector<1x1x32xf32>
    %347 = vector.shape_cast %346 : vector<1x1x32xf32> to vector<1x32xf32>
    %cst_153 = arith.constant dense<0.000000e+00> : vector<16xf32>
    %348 = vector.multi_reduction <add>, %343, %cst_153 [1] : vector<16x32xf32> to vector<16xf32>
    %349 = vector.shape_cast %348 : vector<16xf32> to vector<16x1xf32>
    %cst_154 = arith.constant 3.200000e+01 : f32
    %350 = vector.broadcast %cst_154 : f32 to vector<16x1xf32>
    %351 = arith.divf %349, %350 : vector<16x1xf32>
    %352 = vector.broadcast %351 : vector<16x1xf32> to vector<16x32xf32>
    %353 = arith.subf %343, %352 : vector<16x32xf32>
    %354 = arith.mulf %353, %353 : vector<16x32xf32>
    %cst_155 = arith.constant dense<0.000000e+00> : vector<16xf32>
    %355 = vector.multi_reduction <add>, %354, %cst_155 [1] : vector<16x32xf32> to vector<16xf32>
    %356 = vector.shape_cast %355 : vector<16xf32> to vector<16x1xf32>
    %cst_156 = arith.constant 3.200000e+01 : f32
    %357 = vector.broadcast %cst_156 : f32 to vector<16x1xf32>
    %358 = arith.divf %356, %357 : vector<16x1xf32>
    %cst_157 = arith.constant 9.99999996E-13 : f32
    %359 = vector.broadcast %cst_157 : f32 to vector<16x1xf32>
    %360 = arith.addf %358, %359 : vector<16x1xf32>
    %361 = math.rsqrt %360 : vector<16x1xf32>
    %362 = vector.broadcast %361 : vector<16x1xf32> to vector<16x32xf32>
    %363 = arith.mulf %353, %362 : vector<16x32xf32>
    %364 = vector.broadcast %345 : vector<1x32xf32> to vector<16x32xf32>
    %365 = arith.mulf %363, %364 : vector<16x32xf32>
    %366 = vector.broadcast %347 : vector<1x32xf32> to vector<16x32xf32>
    %367 = arith.addf %365, %366 : vector<16x32xf32>
    %368 = vector.extract_strided_slice %367 {offsets = [0, 0], sizes = [1, 32], strides = [1, 1]} : vector<16x32xf32> to vector<1x32xf32>
    %369 = vector.extract_strided_slice %367 {offsets = [8, 0], sizes = [1, 32], strides = [1, 1]} : vector<16x32xf32> to vector<1x32xf32>
    %370 = tpu.concatenate %368, %369 in 0 : vector<1x32xf32>, vector<1x32xf32> -> vector<2x32xf32>
    %c0_158 = arith.constant 0 : index
    %c0_159 = arith.constant 0 : index
    %371 = vector.load %arg16[%c0_158, %c0_159] : memref<32x32xf32, #tpu.memory_space<vmem>>, vector<32x32xf32>
    %cst_160 = arith.constant dense<0.000000e+00> : vector<2x32xf32>
    %372 = tpu.matmul %370, %371, %cst_160 {dimension_numbers = #tpu.dot_dimension_numbers<[1], [0], [0], [1], [0, 0, 1, 1], [], []>} : vector<2x32xf32>, vector<32x32xf32>, vector<2x32xf32> -> vector<2x32xf32>
    %c0_161 = arith.constant 0 : index
    %c0_162 = arith.constant 0 : index
    %373 = vector.load %arg17[%c0_161, %c0_162] : memref<1x32xf32, #tpu.memory_space<vmem>>, vector<1x32xf32>
    %374 = vector.broadcast %373 : vector<1x32xf32> to vector<2x32xf32>
    %375 = arith.addf %372, %374 : vector<2x32xf32>
    %376 = math.tanh %375 : vector<2x32xf32>
    %c0_163 = arith.constant 0 : index
    %c0_164 = arith.constant 0 : index
    %377 = vector.load %arg18[%c0_163, %c0_164] : memref<32x128xf32, #tpu.memory_space<vmem>>, vector<32x128xf32>
    %cst_165 = arith.constant dense<0.000000e+00> : vector<2x128xf32>
    %378 = tpu.matmul %376, %377, %cst_165 {dimension_numbers = #tpu.dot_dimension_numbers<[1], [0], [0], [1], [0, 0, 1, 1], [], []>} : vector<2x32xf32>, vector<32x128xf32>, vector<2x128xf32> -> vector<2x128xf32>
    %c0_166 = arith.constant 0 : index
    %c0_167 = arith.constant 0 : index
    %379 = vector.load %arg19[%c0_166, %c0_167] : memref<1x128xf32, #tpu.memory_space<vmem>>, vector<1x128xf32>
    %380 = vector.broadcast %379 : vector<1x128xf32> to vector<2x128xf32>
    %381 = arith.addf %378, %380 : vector<2x128xf32>
    %c0_168 = arith.constant 0 : index
    %c0_169 = arith.constant 0 : index
    %382 = vector.load %arg20[%c0_168, %c0_169] : memref<2x128xf32, #tpu.memory_space<vmem>>, vector<2x128xf32>
    tpu.vector_store %arg20[%c0_168, %c0_169], %381 {strides = array<i32>} : memref<2x128xf32, #tpu.memory_space<vmem>>, vector<2x128xf32>,
    return
  }
}

</mosaic_0001>

<llo_original>
// kernel: bert_classify_forward.1
$region0: #{bert_classify_forward.1}
  #allocation0 [shape = 'u32[]', space=smem, size = 0x4, offset = 0x4, fixed_abs, tag = 'smem constant byte address 0x4 - core index']
  #allocation1 [shape = 'u32[72,128]{1,0:T(1,128)}', space=vmem, size = 0x9000, scoped, tag = 'internal scratch']
  %s0 = inlined_call_operand.vmem [shape: f32[16,32], index: 0, kind: input, shape index: {}]
  %s1 = inlined_call_operand.vmem [shape: f32[2,8], index: 1, kind: input, shape index: {}]
  %s2 = inlined_call_operand.vmem [shape: f32[1,32], index: 2, kind: input, shape index: {}]
  %s3 = inlined_call_operand.vmem [shape: f32[1,32], index: 3, kind: input, shape index: {}]
  %s4 = inlined_call_operand.vmem [shape: f32[2,32,96], index: 4, kind: input, shape index: {}]
  %s5 = inlined_call_operand.vmem [shape: f32[2,1,96], index: 5, kind: input, shape index: {}]
  %s6 = inlined_call_operand.vmem [shape: f32[2,32,32], index: 6, kind: input, shape index: {}]
  %s7 = inlined_call_operand.vmem [shape: f32[2,1,32], index: 7, kind: input, shape index: {}]
  %s8 = inlined_call_operand.vmem [shape: f32[2,1,32], index: 8, kind: input, shape index: {}]
  %s9 = inlined_call_operand.vmem [shape: f32[2,1,32], index: 9, kind: input, shape index: {}]
  %s10 = inlined_call_operand.vmem [shape: f32[2,32,64], index: 10, kind: input, shape index: {}]
  %s11 = inlined_call_operand.vmem [shape: f32[2,1,64], index: 11, kind: input, shape index: {}]
  %s12 = inlined_call_operand.vmem [shape: f32[2,64,32], index: 12, kind: input, shape index: {}]
  %s13 = inlined_call_operand.vmem [shape: f32[2,1,32], index: 13, kind: input, shape index: {}]
  %s14 = inlined_call_operand.vmem [shape: f32[2,1,32], index: 14, kind: input, shape index: {}]
  %s15 = inlined_call_operand.vmem [shape: f32[2,1,32], index: 15, kind: input, shape index: {}]
  %s16 = inlined_call_operand.vmem [shape: f32[32,32], index: 16, kind: input, shape index: {}]
  %s17 = inlined_call_operand.vmem [shape: f32[1,32], index: 17, kind: input, shape index: {}]
  %s18 = inlined_call_operand.vmem [shape: f32[32,128], index: 18, kind: input, shape index: {}]
  %s19 = inlined_call_operand.vmem [shape: f32[1,128], index: 19, kind: input, shape index: {}]
  %s20 = inlined_call_operand.hbm [shape: f32[2,128], index: 20, kind: output, shape index: {}]
  %s21 = sld [smem:[#allocation0]]
  $region90: #{bert_classify_forward.1} parent=0
    _
  %s23 = ssub.s32 1, %s21
  %s24 = scalar_select 0, %s23, %s21
  $region1: #{bert_classify_forward.1} parent=0
    #allocation2 [shape = 'u8[1024]{0}', space=vmem, size = 0x400, scoped, tag = 'output window, operand 0, single buffered']
    #allocation3 [shape = 's32[1]{0}', space=sflag, size = 0x4, scoped, tag = 'scoped memory for bert_classify_forward.1']
    %25 = vsyncpa [#allocation3], 0
    // Predicated region
    $region2: #{bert_classify_forward.1} parent=1 // pred_check
      _
    $region3: #{bert_classify_forward.1} parent=1 // pred_check_branch
      %27 = sbr.rel (0) target = $region5
    $region4: #{bert_classify_forward.1} parent=1 // pred_region
      _
    $region5: #{bert_classify_forward.1} parent=1 // pred_fallthru
      _
    // Predicated region
    $region6: #{bert_classify_forward.1} parent=1 // pred_check
      _
    $region7: #{bert_classify_forward.1} parent=1 // pred_check_branch
      %29 = sbr.rel (0) target = $region9
    $region8: #{bert_classify_forward.1} parent=1 // pred_region
      _
    $region9: #{bert_classify_forward.1} parent=1 // pred_fallthru
      _
    // Predicated region
    $region10: #{bert_classify_forward.1} parent=1 // pred_check
      _
    $region11: #{bert_classify_forward.1} parent=1 // pred_check_branch
      %31 = sbr.rel (0) target = $region13
    $region12: #{bert_classify_forward.1} parent=1 // pred_region
      _
    $region13: #{bert_classify_forward.1} parent=1 // pred_fallthru
      _
    // Predicated region
    $region14: #{bert_classify_forward.1} parent=1 // pred_check
      _
    $region15: #{bert_classify_forward.1} parent=1 // pred_check_branch
      %33 = sbr.rel (0) target = $region17
    $region16: #{bert_classify_forward.1} parent=1 // pred_region
      _
    $region17: #{bert_classify_forward.1} parent=1 // pred_fallthru
      _
    // Predicated region
    $region18: #{bert_classify_forward.1} parent=1 // pred_check
      _
    $region19: #{bert_classify_forward.1} parent=1 // pred_check_branch
      %35 = sbr.rel (0) target = $region21
    $region20: #{bert_classify_forward.1} parent=1 // pred_region
      _
    $region21: #{bert_classify_forward.1} parent=1 // pred_fallthru
      _
    // Predicated region
    $region22: #{bert_classify_forward.1} parent=1 // pred_check
      _
    $region23: #{bert_classify_forward.1} parent=1 // pred_check_branch
      %37 = sbr.rel (0) target = $region25
    $region24: #{bert_classify_forward.1} parent=1 // pred_region
      _
    $region25: #{bert_classify_forward.1} parent=1 // pred_fallthru
      _
    // Predicated region
    $region26: #{bert_classify_forward.1} parent=1 // pred_check
      _
    $region27: #{bert_classify_forward.1} parent=1 // pred_check_branch
      %39 = sbr.rel (0) target = $region29
    $region28: #{bert_classify_forward.1} parent=1 // pred_region
      _
    $region29: #{bert_classify_forward.1} parent=1 // pred_fallthru
      _
    // Predicated region
    $region30: #{bert_classify_forward.1} parent=1 // pred_check
      _
    $region31: #{bert_classify_forward.1} parent=1 // pred_check_branch
      %41 = sbr.rel (0) target = $region33
    $region32: #{bert_classify_forward.1} parent=1 // pred_region
      _
    $region33: #{bert_classify_forward.1} parent=1 // pred_fallthru
      _
    // Predicated region
    $region34: #{bert_classify_forward.1} parent=1 // pred_check
      _
    $region35: #{bert_classify_forward.1} parent=1 // pred_check_branch
      %43 = sbr.rel (0) target = $region37
    $region36: #{bert_classify_forward.1} parent=1 // pred_region
      _
    $region37: #{bert_classify_forward.1} parent=1 // pred_fallthru
      _
    // Predicated region
    $region38: #{bert_classify_forward.1} parent=1 // pred_check
      _
    $region39: #{bert_classify_forward.1} parent=1 // pred_check_branch
      %45 = sbr.rel (0) target = $region41
    $region40: #{bert_classify_forward.1} parent=1 // pred_region
      _
    $region41: #{bert_classify_forward.1} parent=1 // pred_fallthru
      _
    // Predicated region
    $region42: #{bert_classify_forward.1} parent=1 // pred_check
      _
    $region43: #{bert_classify_forward.1} parent=1 // pred_check_branch
      %47 = sbr.rel (0) target = $region45
    $region44: #{bert_classify_forward.1} parent=1 // pred_region
      _
    $region45: #{bert_classify_forward.1} parent=1 // pred_fallthru
      _
    // Predicated region
    $region46: #{bert_classify_forward.1} parent=1 // pred_check
      _
    $region47: #{bert_classify_forward.1} parent=1 // pred_check_branch
      %49 = sbr.rel (0) target = $region49
    $region48: #{bert_classify_forward.1} parent=1 // pred_region
      _
    $region49: #{bert_classify_forward.1} parent=1 // pred_fallthru
      _
    // Predicated region
    $region50: #{bert_classify_forward.1} parent=1 // pred_check
      _
    $region51: #{bert_classify_forward.1} parent=1 // pred_check_branch
      %51 = sbr.rel (0) target = $region53
    $region52: #{bert_classify_forward.1} parent=1 // pred_region
      _
    $region53: #{bert_classify_forward.1} parent=1 // pred_fallthru
      _
    // Predicated region
    $region54: #{bert_classify_forward.1} parent=1 // pred_check
      _
    $region55: #{bert_classify_forward.1} parent=1 // pred_check_branch
      %53 = sbr.rel (0) target = $region57
    $region56: #{bert_classify_forward.1} parent=1 // pred_region
      _
    $region57: #{bert_classify_forward.1} parent=1 // pred_fallthru
      _
    // Predicated region
    $region58: #{bert_classify_forward.1} parent=1 // pred_check
      _
    $region59: #{bert_classify_forward.1} parent=1 // pred_check_branch
      %55 = sbr.rel (0) target = $region61
    $region60: #{bert_classify_forward.1} parent=1 // pred_region
      _
    $region61: #{bert_classify_forward.1} parent=1 // pred_fallthru
      _
    // Predicated region
    $region62: #{bert_classify_forward.1} parent=1 // pred_check
      _
    $region63: #{bert_classify_forward.1} parent=1 // pred_check_branch
      %57 = sbr.rel (0) target = $region65
    $region64: #{bert_classify_forward.1} parent=1 // pred_region
      _
    $region65: #{bert_classify_forward.1} parent=1 // pred_fallthru
      _
    // Predicated region
    $region66: #{bert_classify_forward.1} parent=1 // pred_check
      _
    $region67: #{bert_classify_forward.1} parent=1 // pred_check_branch
      %59 = sbr.rel (0) target = $region69
    $region68: #{bert_classify_forward.1} parent=1 // pred_region
      _
    $region69: #{bert_classify_forward.1} parent=1 // pred_fallthru
      _
    // Predicated region
    $region70: #{bert_classify_forward.1} parent=1 // pred_check
      _
    $region71: #{bert_classify_forward.1} parent=1 // pred_check_branch
      %61 = sbr.rel (0) target = $region73
    $region72: #{bert_classify_forward.1} parent=1 // pred_region
      _
    $region73: #{bert_classify_forward.1} parent=1 // pred_fallthru
      _
    // Predicated region
    $region74: #{bert_classify_forward.1} parent=1 // pred_check
      _
    $region75: #{bert_classify_forward.1} parent=1 // pred_check_branch
      %63 = sbr.rel (0) target = $region77
    $region76: #{bert_classify_forward.1} parent=1 // pred_region
      _
    $region77: #{bert_classify_forward.1} parent=1 // pred_fallthru
      _
    // Predicated region
    $region78: #{bert_classify_forward.1} parent=1 // pred_check
      _
    $region79: #{bert_classify_forward.1} parent=1 // pred_check_branch
      %65 = sbr.rel (0) target = $region81
    $region80: #{bert_classify_forward.1} parent=1 // pred_region
      _
    $region81: #{bert_classify_forward.1} parent=1 // pred_fallthru
      _
    %v66 = vld [vmem:[%s0] sm:$0xff]
    %v67 = vld [vmem:[%s0 + $0x8] sm:$0xff]
    %v68 = vld [vmem:[%s2] sm:$0x1]
    %v69 = vld [vmem:[%s3] sm:$0x1]
    %vm70 = vcmask 261120
    %v71 = vsel %vm70, %v66, 0.0
    %72 = vadd.xlane.f32.xlu0 %v71
    %v73 = vpop.xlane.xlu0 %72
    %v74 = vsel %vm70, %v67, 0.0
    %75 = vadd.xlane.f32.xlu0 %v74
    %v76 = vpop.xlane.xlu0 %75
    %v77 = vrcp.pop 32.0
    %v78 = vmul.f32 32.0, %v77
    %v79 = vsub.f32 1.0, %v78
    %v80 = vmul.f32 %v77, %v79
    %v81 = vadd.f32 %v77, %v80
    %vm82 = vweird.f32 %v77
    %v83 = vsel %vm82, %v77, %v81
    %v84 = vmul.f32 %v73, %v83
    %v85 = vmul.f32 %v76, %v83
    %v86 = vsub.f32 %v66, %v84
    %v87 = vsub.f32 %v67, %v85
    %v88 = vmul.f32 %v86, %v86
    %v89 = vmul.f32 %v87, %v87
    %v90 = vsel %vm70, %v88, 0.0
    %91 = vadd.xlane.f32.xlu0 %v90
    %v92 = vpop.xlane.xlu0 %91
    %v93 = vsel %vm70, %v89, 0.0
    %94 = vadd.xlane.f32.xlu0 %v93
    %v95 = vpop.xlane.xlu0 %94
    %v96 = vmul.f32 %v92, %v83
    %v97 = vmul.f32 %v95, %v83
    %v98 = vadd.f32 %v96, 1e-12
    %v99 = vadd.f32 %v97, 1e-12
    %v100 = vrsqrt.pop %v98
    %v101 = vmul.f32 %v100, %v98
    %v102 = vmul.f32 %v101, %v100
    %v103 = vmul.f32 0.5, %v102
    %v104 = vsub.f32 1.5, %v103
    %v105 = vmul.f32 %v100, %v104
    %vm106 = vweird.f32 %v98
    %vm107 = vweird.f32 %v100
    %vm108 = vmor %vm106, %vm107
    %v109 = vsel %vm108, %v100, %v105
    %v110 = vrsqrt.pop %v99
    %v111 = vmul.f32 %v110, %v99
    %v112 = vmul.f32 %v111, %v110
    %v113 = vmul.f32 0.5, %v112
    %v114 = vsub.f32 1.5, %v113
    %v115 = vmul.f32 %v110, %v114
    %vm116 = vweird.f32 %v99
    %vm117 = vweird.f32 %v110
    %vm118 = vmor %vm116, %vm117
    %v119 = vsel %vm118, %v110, %v115
    %v120 = vmul.f32 %v86, %v109
    %v121 = vmul.f32 %v87, %v119
    %v123 = vperm.slane %v68, 0
    %v125 = vmul.f32 %v120, %v123
    %v126 = vmul.f32 %v121, %v123
    %v128 = vperm.slane %v69, 0
    %v130 = vadd.f32 %v125, %v128
    %v131 = vadd.f32 %v126, %v128
    %v132 = vld [vmem:[%s1] sm:$0x3]
    %v133 = vld [vmem:[%s4] sm:$0xff]
    %v134 = vld [vmem:[%s4 + $0x8] sm:$0xff]
    %v135 = vld [vmem:[%s4 + $0x10] sm:$0xff]
    %v136 = vld [vmem:[%s4 + $0x18] sm:$0xff]
    %v137 = vld [vmem:[%s5] sm:$0x1]
    %v138 = vld [vmem:[%s6] sm:$0xff]
    %v139 = vld [vmem:[%s6 + $0x8] sm:$0xff]
    %v140 = vld [vmem:[%s6 + $0x10] sm:$0xff]
    %v141 = vld [vmem:[%s6 + $0x18] sm:$0xff]
    %v142 = vld [vmem:[%s7] sm:$0x1]
    %v143 = vld [vmem:[%s10] sm:$0xff]
    %v144 = vld [vmem:[%s10 + $0x8] sm:$0xff]
    %v145 = vld [vmem:[%s10 + $0x10] sm:$0xff]
    %v146 = vld [vmem:[%s10 + $0x18] sm:$0xff]
    %v147 = vld [vmem:[%s11] sm:$0x1]
    %v148 = vld [vmem:[%s12] sm:$0xff]
    %v149 = vld [vmem:[%s12 + $0x8] sm:$0xff]
    %v150 = vld [vmem:[%s12 + $0x10] sm:$0xff]
    %v151 = vld [vmem:[%s12 + $0x18] sm:$0xff]
    %v152 = vld [vmem:[%s12 + $0x20] sm:$0xff]
    %v153 = vld [vmem:[%s12 + $0x28] sm:$0xff]
    %v154 = vld [vmem:[%s12 + $0x30] sm:$0xff]
    %v155 = vld [vmem:[%s12 + $0x38] sm:$0xff]
    %v156 = vld [vmem:[%s13] sm:$0x1]
    %v158 = vperm.slane %v137, 0
    %v161 = vsel %vm70, %v130, 0
    %v164 = vsel %vm70, %v131, 0
    %166 = vmatpush.msra.mxu0 0.0
    %167 = vmatpush.msra.mxu0 0.0
    %168 = vmatpush.msra.mxu0 0.0
    %169 = vmatpush.msra.mxu0 0.0
    %170 = vmatpush.msra.mxu0 0.0
    %171 = vmatpush.msra.mxu0 0.0
    %172 = vmatpush.msra.mxu0 0.0
    %173 = vmatpush.msra.mxu0 0.0
    %174 = vmatpush.msra.mxu0 0.0
    %175 = vmatpush.msra.mxu0 0.0
    %176 = vmatpush.msra.mxu0 0.0
    %177 = vmatpush.msra.mxu0 0.0
    %178 = vmatpush.msra.mxu0 %v136
    %179 = vmatpush.msra.mxu0 %v135
    %180 = vmatpush.msra.mxu0 %v134
    %181 = vmatpush.msra.mxu0 %v133
    %182 = vmatmul.f32.gmra.mxu0 %v161
    %v183 = vpop.f32.mrf.mxu0
    %v184 = vadd.f32 %v158, %v183
    %185 = vmatmul.f32.gmra.mxu0 %v164
    %v186 = vpop.f32.mrf.mxu0
    %v187 = vadd.f32 %v158, %v186
    %188 = vdwg.mxu0
    %190 = vrot.lane.b32.xlu0 %v184, 96
    %v191 = vpop.permute.xlu0 %190
    %vm192 = vcmask 130048
    %v193 = vsel %vm192, %v184, 0
    %v195 = vsel %vm192, %v191, 0
    %197 = vmatpush.xpose.msra.mxu0 0.0
    %198 = vmatpush.xpose.msra.mxu0 0.0
    %199 = vmatpush.xpose.msra.mxu0 0.0
    %200 = vmatpush.xpose.msra.mxu0 0.0
    %201 = vmatpush.xpose.msra.mxu0 0.0
    %202 = vmatpush.xpose.msra.mxu0 0.0
    %203 = vmatpush.xpose.msra.mxu0 0.0
    %204 = vmatpush.xpose.msra.mxu0 0.0
    %205 = vmatpush.xpose.msra.mxu0 0.0
    %206 = vmatpush.xpose.msra.mxu0 0.0
    %207 = vmatpush.xpose.msra.mxu0 0.0
    %208 = vmatpush.xpose.msra.mxu0 0.0
    %209 = vmatpush.xpose.msra.mxu0 0.0
    %210 = vmatpush.xpose.msra.mxu0 0.0
    %211 = vmatpush.xpose.msra.mxu0 0.0
    %212 = vmatpush.xpose.msra.mxu0 %v195
    %213 = vmatmul.f32.gmra.mxu0 %v193
    %v214 = vpop.f32.mrf.mxu0
    %v215 = vadd.f32 0.0, %v214
    %216 = vdwg.mxu0
    %v217 = vmul.f32 %v215, 0.25
    %v218 = vperm.slane %v132, 0
    %v219 = vadd.f32 %v217, %v218
    %vm220 = vcmask 64512
    %v221 = vsel %vm220, %v219, -inf
    %222 = vmax.xlane.f32.xlu0 %v221
    %v223 = vpop.xlane.xlu0 %222
    %v224 = vsub.f32 %v219, %v223
    %v225 = vmul.f32 %v224, 1.442695
    %v226 = vpow.pop %v225
    %v227 = vsel %vm220, %v226, 0.0
    %228 = vadd.xlane.f32.xlu0 %v227
    %v229 = vpop.xlane.xlu0 %228
    %v230 = vrcp.pop %v229
    %v231 = vmul.f32 %v226, %v230
    %232 = vrot.lane.b32.xlu0 %v184, 64
    %v233 = vpop.permute.xlu0 %232
    %v236 = vsel %vm220, %v231, 0
    %238 = vmatpush.msra.mxu0 0.0
    %239 = vmatpush.msra.mxu0 0.0
    %240 = vmatpush.msra.mxu0 0.0
    %241 = vmatpush.msra.mxu0 0.0
    %242 = vmatpush.msra.mxu0 0.0
    %243 = vmatpush.msra.mxu0 0.0
    %244 = vmatpush.msra.mxu0 0.0
    %245 = vmatpush.msra.mxu0 0.0
    %246 = vmatpush.msra.mxu0 0.0
    %247 = vmatpush.msra.mxu0 0.0
    %248 = vmatpush.msra.mxu0 0.0
    %249 = vmatpush.msra.mxu0 0.0
    %250 = vmatpush.msra.mxu0 0.0
    %251 = vmatpush.msra.mxu0 0.0
    %252 = vmatpush.msra.mxu0 0.0
    %253 = vmatpush.msra.mxu0 %v233
    %254 = vmatmul.f32.gmra.mxu0 %v236
    %v255 = vpop.f32.mrf.mxu0
    %v256 = vadd.f32 0.0, %v255
    %257 = vdwg.mxu0
    %258 = vrot.lane.b32.xlu0 %v184, 112
    %v259 = vpop.permute.xlu0 %258
    %260 = vrot.lane.b32.xlu0 %v184, 80
    %v261 = vpop.permute.xlu0 %260
    %v262 = vsel %vm192, %v259, 0
    %v264 = vsel %vm192, %v261, 0
    %266 = vmatpush.xpose.msra.mxu0 0.0
    %267 = vmatpush.xpose.msra.mxu0 0.0
    %268 = vmatpush.xpose.msra.mxu0 0.0
    %269 = vmatpush.xpose.msra.mxu0 0.0
    %270 = vmatpush.xpose.msra.mxu0 0.0
    %271 = vmatpush.xpose.msra.mxu0 0.0
    %272 = vmatpush.xpose.msra.mxu0 0.0
    %273 = vmatpush.xpose.msra.mxu0 0.0
    %274 = vmatpush.xpose.msra.mxu0 0.0
    %275 = vmatpush.xpose.msra.mxu0 0.0
    %276 = vmatpush.xpose.msra.mxu0 0.0
    %277 = vmatpush.xpose.msra.mxu0 0.0
    %278 = vmatpush.xpose.msra.mxu0 0.0
    %279 = vmatpush.xpose.msra.mxu0 0.0
    %280 = vmatpush.xpose.msra.mxu0 0.0
    %281 = vmatpush.xpose.msra.mxu0 %v264
    %282 = vmatmul.f32.gmra.mxu0 %v262
    %v283 = vpop.f32.mrf.mxu0
    %v284 = vadd.f32 0.0, %v283
    %285 = vdwg.mxu0
    %v286 = vmul.f32 %v284, 0.25
    %v287 = vadd.f32 %v286, %v218
    %v288 = vsel %vm220, %v287, -inf
    %289 = vmax.xlane.f32.xlu0 %v288
    %v290 = vpop.xlane.xlu0 %289
    %v291 = vsub.f32 %v287, %v290
    %v292 = vmul.f32 %v291, 1.442695
    %v293 = vpow.pop %v292
    %v294 = vsel %vm220, %v293, 0.0
    %295 = vadd.xlane.f32.xlu0 %v294
    %v296 = vpop.xlane.xlu0 %295
    %v297 = vrcp.pop %v296
    %v298 = vmul.f32 %v293, %v297
    %299 = vrot.lane.b32.xlu0 %v184, 48
    %v300 = vpop.permute.xlu0 %299
    %v303 = vsel %vm220, %v298, 0
    %305 = vmatpush.msra.mxu0 0.0
    %306 = vmatpush.msra.mxu0 0.0
    %307 = vmatpush.msra.mxu0 0.0
    %308 = vmatpush.msra.mxu0 0.0
    %309 = vmatpush.msra.mxu0 0.0
    %310 = vmatpush.msra.mxu0 0.0
    %311 = vmatpush.msra.mxu0 0.0
    %312 = vmatpush.msra.mxu0 0.0
    %313 = vmatpush.msra.mxu0 0.0
    %314 = vmatpush.msra.mxu0 0.0
    %315 = vmatpush.msra.mxu0 0.0
    %316 = vmatpush.msra.mxu0 0.0
    %317 = vmatpush.msra.mxu0 0.0
    %318 = vmatpush.msra.mxu0 0.0
    %319 = vmatpush.msra.mxu0 0.0
    %320 = vmatpush.msra.mxu0 %v300
    %321 = vmatmul.f32.gmra.mxu0 %v303
    %v322 = vpop.f32.mrf.mxu0
    %v323 = vadd.f32 0.0, %v322
    %324 = vdwg.mxu0
    %326 = vrot.lane.b32.xlu0 %v323, 16
    %v327 = vpop.permute.xlu0 %326
    %v329 = vsel %vm192, %v256, %v327
    %331 = vrot.lane.b32.xlu0 %v187, 96
    %v332 = vpop.permute.xlu0 %331
    %v333 = vsel %vm192, %v187, 0
    %v335 = vsel %vm192, %v332, 0
    %337 = vmatpush.xpose.msra.mxu0 0.0
    %338 = vmatpush.xpose.msra.mxu0 0.0
    %339 = vmatpush.xpose.msra.mxu0 0.0
    %340 = vmatpush.xpose.msra.mxu0 0.0
    %341 = vmatpush.xpose.msra.mxu0 0.0
    %342 = vmatpush.xpose.msra.mxu0 0.0
    %343 = vmatpush.xpose.msra.mxu0 0.0
    %344 = vmatpush.xpose.msra.mxu0 0.0
    %345 = vmatpush.xpose.msra.mxu0 0.0
    %346 = vmatpush.xpose.msra.mxu0 0.0
    %347 = vmatpush.xpose.msra.mxu0 0.0
    %348 = vmatpush.xpose.msra.mxu0 0.0
    %349 = vmatpush.xpose.msra.mxu0 0.0
    %350 = vmatpush.xpose.msra.mxu0 0.0
    %351 = vmatpush.xpose.msra.mxu0 0.0
    %352 = vmatpush.xpose.msra.mxu0 %v335
    %353 = vmatmul.f32.gmra.mxu0 %v333
    %v354 = vpop.f32.mrf.mxu0
    %v355 = vadd.f32 0.0, %v354
    %356 = vdwg.mxu0
    %v357 = vmul.f32 %v355, 0.25
    %v358 = vperm.slane %v132, 1
    %v359 = vadd.f32 %v357, %v358
    %v360 = vsel %vm220, %v359, -inf
    %361 = vmax.xlane.f32.xlu0 %v360
    %v362 = vpop.xlane.xlu0 %361
    %v363 = vsub.f32 %v359, %v362
    %v364 = vmul.f32 %v363, 1.442695
    %v365 = vpow.pop %v364
    %v366 = vsel %vm220, %v365, 0.0
    %367 = vadd.xlane.f32.xlu0 %v366
    %v368 = vpop.xlane.xlu0 %367
    %v369 = vrcp.pop %v368
    %v370 = vmul.f32 %v365, %v369
    %371 = vrot.lane.b32.xlu0 %v187, 64
    %v372 = vpop.permute.xlu0 %371
    %v375 = vsel %vm220, %v370, 0
    %377 = vmatpush.msra.mxu0 0.0
    %378 = vmatpush.msra.mxu0 0.0
    %379 = vmatpush.msra.mxu0 0.0
    %380 = vmatpush.msra.mxu0 0.0
    %381 = vmatpush.msra.mxu0 0.0
    %382 = vmatpush.msra.mxu0 0.0
    %383 = vmatpush.msra.mxu0 0.0
    %384 = vmatpush.msra.mxu0 0.0
    %385 = vmatpush.msra.mxu0 0.0
    %386 = vmatpush.msra.mxu0 0.0
    %387 = vmatpush.msra.mxu0 0.0
    %388 = vmatpush.msra.mxu0 0.0
    %389 = vmatpush.msra.mxu0 0.0
    %390 = vmatpush.msra.mxu0 0.0
    %391 = vmatpush.msra.mxu0 0.0
    %392 = vmatpush.msra.mxu0 %v372
    %393 = vmatmul.f32.gmra.mxu0 %v375
    %v394 = vpop.f32.mrf.mxu0
    %v395 = vadd.f32 0.0, %v394
    %396 = vdwg.mxu0
    %397 = vrot.lane.b32.xlu0 %v187, 112
    %v398 = vpop.permute.xlu0 %397
    %399 = vrot.lane.b32.xlu0 %v187, 80
    %v400 = vpop.permute.xlu0 %399
    %v401 = vsel %vm192, %v398, 0
    %v403 = vsel %vm192, %v400, 0
    %405 = vmatpush.xpose.msra.mxu0 0.0
    %406 = vmatpush.xpose.msra.mxu0 0.0
    %407 = vmatpush.xpose.msra.mxu0 0.0
    %408 = vmatpush.xpose.msra.mxu0 0.0
    %409 = vmatpush.xpose.msra.mxu0 0.0
    %410 = vmatpush.xpose.msra.mxu0 0.0
    %411 = vmatpush.xpose.msra.mxu0 0.0
    %412 = vmatpush.xpose.msra.mxu0 0.0
    %413 = vmatpush.xpose.msra.mxu0 0.0
    %414 = vmatpush.xpose.msra.mxu0 0.0
    %415 = vmatpush.xpose.msra.mxu0 0.0
    %416 = vmatpush.xpose.msra.mxu0 0.0
    %417 = vmatpush.xpose.msra.mxu0 0.0
    %418 = vmatpush.xpose.msra.mxu0 0.0
    %419 = vmatpush.xpose.msra.mxu0 0.0
    %420 = vmatpush.xpose.msra.mxu0 %v403
    %421 = vmatmul.f32.gmra.mxu0 %v401
    %v422 = vpop.f32.mrf.mxu0
    %v423 = vadd.f32 0.0, %v422
    %424 = vdwg.mxu0
    %v425 = vmul.f32 %v423, 0.25
    %v426 = vadd.f32 %v425, %v358
    %v427 = vsel %vm220, %v426, -inf
    %428 = vmax.xlane.f32.xlu0 %v427
    %v429 = vpop.xlane.xlu0 %428
    %v430 = vsub.f32 %v426, %v429
    %v431 = vmul.f32 %v430, 1.442695
    %v432 = vpow.pop %v431
    %v433 = vsel %vm220, %v432, 0.0
    %434 = vadd.xlane.f32.xlu0 %v433
    %v435 = vpop.xlane.xlu0 %434
    %v436 = vrcp.pop %v435
    %v437 = vmul.f32 %v432, %v436
    %438 = vrot.lane.b32.xlu0 %v187, 48
    %v439 = vpop.permute.xlu0 %438
    %v442 = vsel %vm220, %v437, 0
    %444 = vmatpush.msra.mxu0 0.0
    %445 = vmatpush.msra.mxu0 0.0
    %446 = vmatpush.msra.mxu0 0.0
    %447 = vmatpush.msra.mxu0 0.0
    %448 = vmatpush.msra.mxu0 0.0
    %449 = vmatpush.msra.mxu0 0.0
    %450 = vmatpush.msra.mxu0 0.0
    %451 = vmatpush.msra.mxu0 0.0
    %452 = vmatpush.msra.mxu0 0.0
    %453 = vmatpush.msra.mxu0 0.0
    %454 = vmatpush.msra.mxu0 0.0
    %455 = vmatpush.msra.mxu0 0.0
    %456 = vmatpush.msra.mxu0 0.0
    %457 = vmatpush.msra.mxu0 0.0
    %458 = vmatpush.msra.mxu0 0.0
    %459 = vmatpush.msra.mxu0 %v439
    %460 = vmatmul.f32.gmra.mxu0 %v442
    %v461 = vpop.f32.mrf.mxu0
    %v462 = vadd.f32 0.0, %v461
    %463 = vdwg.mxu0
    %465 = vrot.lane.b32.xlu0 %v462, 16
    %v466 = vpop.permute.xlu0 %465
    %v468 = vsel %vm192, %v395, %v466
    %v470 = vperm.slane %v142, 0
    %v473 = vsel %vm70, %v329, 0
    %v476 = vsel %vm70, %v468, 0
    %478 = vmatpush.msra.mxu0 0.0
    %479 = vmatpush.msra.mxu0 0.0
    %480 = vmatpush.msra.mxu0 0.0
    %481 = vmatpush.msra.mxu0 0.0
    %482 = vmatpush.msra.mxu0 0.0
    %483 = vmatpush.msra.mxu0 0.0
    %484 = vmatpush.msra.mxu0 0.0
    %485 = vmatpush.msra.mxu0 0.0
    %486 = vmatpush.msra.mxu0 0.0
    %487 = vmatpush.msra.mxu0 0.0
    %488 = vmatpush.msra.mxu0 0.0
    %489 = vmatpush.msra.mxu0 0.0
    %490 = vmatpush.msra.mxu0 %v141
    %491 = vmatpush.msra.mxu0 %v140
    %492 = vmatpush.msra.mxu0 %v139
    %493 = vmatpush.msra.mxu0 %v138
    %494 = vmatmul.f32.gmra.mxu0 %v473
    %v495 = vpop.f32.mrf.mxu0
    %v496 = vadd.f32 %v470, %v495
    %497 = vmatmul.f32.gmra.mxu0 %v476
    %v498 = vpop.f32.mrf.mxu0
    %v499 = vadd.f32 %v470, %v498
    %500 = vdwg.mxu0
    %v501 = vadd.f32 %v130, %v496
    %v502 = vadd.f32 %v131, %v499
    %v503 = vld [vmem:[%s8] sm:$0x1]
    %v504 = vld [vmem:[%s9] sm:$0x1]
    %v505 = vsel %vm70, %v501, 0.0
    %506 = vadd.xlane.f32.xlu0 %v505
    %v507 = vpop.xlane.xlu0 %506
    %v508 = vsel %vm70, %v502, 0.0
    %509 = vadd.xlane.f32.xlu0 %v508
    %v510 = vpop.xlane.xlu0 %509
    %v511 = vmul.f32 %v507, %v83
    %v512 = vmul.f32 %v510, %v83
    %v513 = vsub.f32 %v501, %v511
    %v514 = vsub.f32 %v502, %v512
    %v515 = vmul.f32 %v513, %v513
    %v516 = vmul.f32 %v514, %v514
    %v517 = vsel %vm70, %v515, 0.0
    %518 = vadd.xlane.f32.xlu0 %v517
    %v519 = vpop.xlane.xlu0 %518
    %v520 = vsel %vm70, %v516, 0.0
    %521 = vadd.xlane.f32.xlu0 %v520
    %v522 = vpop.xlane.xlu0 %521
    %v523 = vmul.f32 %v519, %v83
    %v524 = vmul.f32 %v522, %v83
    %v525 = vadd.f32 %v523, 1e-12
    %v526 = vadd.f32 %v524, 1e-12
    %v527 = vrsqrt.pop %v525
    %v528 = vmul.f32 %v527, %v525
    %v529 = vmul.f32 %v528, %v527
    %v530 = vmul.f32 0.5, %v529
    %v531 = vsub.f32 1.5, %v530
    %v532 = vmul.f32 %v527, %v531
    %vm533 = vweird.f32 %v525
    %vm534 = vweird.f32 %v527
    %vm535 = vmor %vm533, %vm534
    %v536 = vsel %vm535, %v527, %v532
    %v537 = vrsqrt.pop %v526
    %v538 = vmul.f32 %v537, %v526
    %v539 = vmul.f32 %v538, %v537
    %v540 = vmul.f32 0.5, %v539
    %v541 = vsub.f32 1.5, %v540
    %v542 = vmul.f32 %v537, %v541
    %vm543 = vweird.f32 %v526
    %vm544 = vweird.f32 %v537
    %vm545 = vmor %vm543, %vm544
    %v546 = vsel %vm545, %v537, %v542
    %v547 = vmul.f32 %v513, %v536
    %v548 = vmul.f32 %v514, %v546
    %v550 = vperm.slane %v503, 0
    %v552 = vmul.f32 %v547, %v550
    %v553 = vmul.f32 %v548, %v550
    %v555 = vperm.slane %v504, 0
    %v557 = vadd.f32 %v552, %v555
    %v558 = vadd.f32 %v553, %v555
    %v560 = vperm.slane %v147, 0
    %v563 = vsel %vm70, %v557, 0
    %v566 = vsel %vm70, %v558, 0
    %568 = vmatpush.msra.mxu0 0.0
    %569 = vmatpush.msra.mxu0 0.0
    %570 = vmatpush.msra.mxu0 0.0
    %571 = vmatpush.msra.mxu0 0.0
    %572 = vmatpush.msra.mxu0 0.0
    %573 = vmatpush.msra.mxu0 0.0
    %574 = vmatpush.msra.mxu0 0.0
    %575 = vmatpush.msra.mxu0 0.0
    %576 = vmatpush.msra.mxu0 0.0
    %577 = vmatpush.msra.mxu0 0.0
    %578 = vmatpush.msra.mxu0 0.0
    %579 = vmatpush.msra.mxu0 0.0
    %580 = vmatpush.msra.mxu0 %v146
    %581 = vmatpush.msra.mxu0 %v145
    %582 = vmatpush.msra.mxu0 %v144
    %583 = vmatpush.msra.mxu0 %v143
    %584 = vmatmul.f32.gmra.mxu0 %v563
    %v585 = vpop.f32.mrf.mxu0
    %v586 = vadd.f32 %v560, %v585
    %587 = vmatmul.f32.gmra.mxu0 %v566
    %v588 = vpop.f32.mrf.mxu0
    %v589 = vadd.f32 %v560, %v588
    %590 = vdwg.mxu0
    %v591 = vmul.f32 %v586, 0.5
    %v592 = vmul.f32 %v589, 0.5
    %v593 = vmul.f32 %v586, 0.044715
    %v594 = vmul.f32 %v589, 0.044715
    %v595 = vmul.f32 %v593, %v586
    %v596 = vmul.f32 %v594, %v589
    %v597 = vmul.f32 %v595, %v586
    %v598 = vmul.f32 %v596, %v589
    %v599 = vadd.f32 %v586, %v597
    %v600 = vadd.f32 %v589, %v598
    %v601 = vmul.f32 %v599, 0.7978846
    %v602 = vmul.f32 %v600, 0.7978846
    %v603 = vtanh.pop %v601
    %v604 = vtanh.pop %v602
    %v605 = vadd.f32 %v603, 1.0
    %v606 = vadd.f32 %v604, 1.0
    %v607 = vmul.f32 %v591, %v605
    %v608 = vmul.f32 %v592, %v606
    %v610 = vperm.slane %v156, 0
    %vm612 = vcmask 523264
    %v614 = vsel %vm612, %v607, 0
    %v617 = vsel %vm612, %v608, 0
    %619 = vmatpush.msra.mxu0 0.0
    %620 = vmatpush.msra.mxu0 0.0
    %621 = vmatpush.msra.mxu0 0.0
    %622 = vmatpush.msra.mxu0 0.0
    %623 = vmatpush.msra.mxu0 0.0
    %624 = vmatpush.msra.mxu0 0.0
    %625 = vmatpush.msra.mxu0 0.0
    %626 = vmatpush.msra.mxu0 0.0
    %627 = vmatpush.msra.mxu0 %v155
    %628 = vmatpush.msra.mxu0 %v154
    %629 = vmatpush.msra.mxu0 %v153
    %630 = vmatpush.msra.mxu0 %v152
    %631 = vmatpush.msra.mxu0 %v151
    %632 = vmatpush.msra.mxu0 %v150
    %633 = vmatpush.msra.mxu0 %v149
    %634 = vmatpush.msra.mxu0 %v148
    %635 = vmatmul.f32.gmra.mxu0 %v614
    %v636 = vpop.f32.mrf.mxu0
    %v637 = vadd.f32 %v610, %v636
    %638 = vmatmul.f32.gmra.mxu0 %v617
    %v639 = vpop.f32.mrf.mxu0
    %v640 = vadd.f32 %v610, %v639
    %641 = vdwg.mxu0
    %v642 = vadd.f32 %v557, %v637
    %v643 = vadd.f32 %v558, %v640
    %v644 = vld [vmem:[%s14] sm:$0x1]
    %v645 = vld [vmem:[%s15] sm:$0x1]
    %v646 = vsel %vm70, %v642, 0.0
    %647 = vadd.xlane.f32.xlu0 %v646
    %v648 = vpop.xlane.xlu0 %647
    %v649 = vsel %vm70, %v643, 0.0
    %650 = vadd.xlane.f32.xlu0 %v649
    %v651 = vpop.xlane.xlu0 %650
    %v652 = vmul.f32 %v648, %v83
    %v653 = vmul.f32 %v651, %v83
    %v654 = vsub.f32 %v642, %v652
    %v655 = vsub.f32 %v643, %v653
    %v656 = vmul.f32 %v654, %v654
    %v657 = vmul.f32 %v655, %v655
    %v658 = vsel %vm70, %v656, 0.0
    %659 = vadd.xlane.f32.xlu0 %v658
    %v660 = vpop.xlane.xlu0 %659
    %v661 = vsel %vm70, %v657, 0.0
    %662 = vadd.xlane.f32.xlu0 %v661
    %v663 = vpop.xlane.xlu0 %662
    %v664 = vmul.f32 %v660, %v83
    %v665 = vmul.f32 %v663, %v83
    %v666 = vadd.f32 %v664, 1e-12
    %v667 = vadd.f32 %v665, 1e-12
    %v668 = vrsqrt.pop %v666
    %v669 = vmul.f32 %v668, %v666
    %v670 = vmul.f32 %v669, %v668
    %v671 = vmul.f32 0.5, %v670
    %v672 = vsub.f32 1.5, %v671
    %v673 = vmul.f32 %v668, %v672
    %vm674 = vweird.f32 %v666
    %vm675 = vweird.f32 %v668
    %vm676 = vmor %vm674, %vm675
    %v677 = vsel %vm676, %v668, %v673
    %v678 = vrsqrt.pop %v667
    %v679 = vmul.f32 %v678, %v667
    %v680 = vmul.f32 %v679, %v678
    %v681 = vmul.f32 0.5, %v680
    %v682 = vsub.f32 1.5, %v681
    %v683 = vmul.f32 %v678, %v682
    %vm684 = vweird.f32 %v667
    %vm685 = vweird.f32 %v678
    %vm686 = vmor %vm684, %vm685
    %v687 = vsel %vm686, %v678, %v683
    %v688 = vmul.f32 %v654, %v677
    %v689 = vmul.f32 %v655, %v687
    %v691 = vperm.slane %v644, 0
    %v693 = vmul.f32 %v688, %v691
    %v694 = vmul.f32 %v689, %v691
    %v696 = vperm.slane %v645, 0
    %v698 = vadd.f32 %v693, %v696
    %v699 = vadd.f32 %v694, %v696
    %s700 = scalar_lea.vmem %s4, 32
    %v701 = vld [vmem:[%s700] sm:$0xff]
    %v702 = vld [vmem:[%s700 + $0x8] sm:$0xff]
    %v703 = vld [vmem:[%s700 + $0x10] sm:$0xff]
    %v704 = vld [vmem:[%s700 + $0x18] sm:$0xff]
    %s705 = scalar_lea.vmem %s5, 1
    %v706 = vld [vmem:[%s705] sm:$0x1]
    %s707 = scalar_lea.vmem %s6, 32
    %v708 = vld [vmem:[%s707] sm:$0xff]
    %v709 = vld [vmem:[%s707 + $0x8] sm:$0xff]
    %v710 = vld [vmem:[%s707 + $0x10] sm:$0xff]
    %v711 = vld [vmem:[%s707 + $0x18] sm:$0xff]
    %s712 = scalar_lea.vmem %s7, 1
    %v713 = vld [vmem:[%s712] sm:$0x1]
    %s714 = scalar_lea.vmem %s10, 32
    %v715 = vld [vmem:[%s714] sm:$0xff]
    %v716 = vld [vmem:[%s714 + $0x8] sm:$0xff]
    %v717 = vld [vmem:[%s714 + $0x10] sm:$0xff]
    %v718 = vld [vmem:[%s714 + $0x18] sm:$0xff]
    %s719 = scalar_lea.vmem %s11, 1
    %v720 = vld [vmem:[%s719] sm:$0x1]
    %s721 = scalar_lea.vmem %s12, 64
    %v722 = vld [vmem:[%s721] sm:$0xff]
    %v723 = vld [vmem:[%s721 + $0x8] sm:$0xff]
    %v724 = vld [vmem:[%s721 + $0x10] sm:$0xff]
    %v725 = vld [vmem:[%s721 + $0x18] sm:$0xff]
    %v726 = vld [vmem:[%s721 + $0x20] sm:$0xff]
    %v727 = vld [vmem:[%s721 + $0x28] sm:$0xff]
    %v728 = vld [vmem:[%s721 + $0x30] sm:$0xff]
    %v729 = vld [vmem:[%s721 + $0x38] sm:$0xff]
    %s730 = scalar_lea.vmem %s13, 1
    %v731 = vld [vmem:[%s730] sm:$0x1]
    %v733 = vperm.slane %v706, 0
    %v736 = vsel %vm70, %v698, 0
    %v739 = vsel %vm70, %v699, 0
    %741 = vmatpush.msra.mxu0 0.0
    %742 = vmatpush.msra.mxu0 0.0
    %743 = vmatpush.msra.mxu0 0.0
    %744 = vmatpush.msra.mxu0 0.0
    %745 = vmatpush.msra.mxu0 0.0
    %746 = vmatpush.msra.mxu0 0.0
    %747 = vmatpush.msra.mxu0 0.0
    %748 = vmatpush.msra.mxu0 0.0
    %749 = vmatpush.msra.mxu0 0.0
    %750 = vmatpush.msra.mxu0 0.0
    %751 = vmatpush.msra.mxu0 0.0
    %752 = vmatpush.msra.mxu0 0.0
    %753 = vmatpush.msra.mxu0 %v704
    %754 = vmatpush.msra.mxu0 %v703
    %755 = vmatpush.msra.mxu0 %v702
    %756 = vmatpush.msra.mxu0 %v701
    %757 = vmatmul.f32.gmra.mxu0 %v736
    %v758 = vpop.f32.mrf.mxu0
    %v759 = vadd.f32 %v733, %v758
    %760 = vmatmul.f32.gmra.mxu0 %v739
    %v761 = vpop.f32.mrf.mxu0
    %v762 = vadd.f32 %v733, %v761
    %763 = vdwg.mxu0
    %765 = vrot.lane.b32.xlu0 %v759, 96
    %v766 = vpop.permute.xlu0 %765
    %v767 = vsel %vm192, %v759, 0
    %v769 = vsel %vm192, %v766, 0
    %771 = vmatpush.xpose.msra.mxu0 0.0
    %772 = vmatpush.xpose.msra.mxu0 0.0
    %773 = vmatpush.xpose.msra.mxu0 0.0
    %774 = vmatpush.xpose.msra.mxu0 0.0
    %775 = vmatpush.xpose.msra.mxu0 0.0
    %776 = vmatpush.xpose.msra.mxu0 0.0
    %777 = vmatpush.xpose.msra.mxu0 0.0
    %778 = vmatpush.xpose.msra.mxu0 0.0
    %779 = vmatpush.xpose.msra.mxu0 0.0
    %780 = vmatpush.xpose.msra.mxu0 0.0
    %781 = vmatpush.xpose.msra.mxu0 0.0
    %782 = vmatpush.xpose.msra.mxu0 0.0
    %783 = vmatpush.xpose.msra.mxu0 0.0
    %784 = vmatpush.xpose.msra.mxu0 0.0
    %785 = vmatpush.xpose.msra.mxu0 0.0
    %786 = vmatpush.xpose.msra.mxu0 %v769
    %787 = vmatmul.f32.gmra.mxu0 %v767
    %v788 = vpop.f32.mrf.mxu0
    %v789 = vadd.f32 0.0, %v788
    %790 = vdwg.mxu0
    %v791 = vmul.f32 %v789, 0.25
    %v792 = vadd.f32 %v791, %v218
    %v793 = vsel %vm220, %v792, -inf
    %794 = vmax.xlane.f32.xlu0 %v793
    %v795 = vpop.xlane.xlu0 %794
    %v796 = vsub.f32 %v792, %v795
    %v797 = vmul.f32 %v796, 1.442695
    %v798 = vpow.pop %v797
    %v799 = vsel %vm220, %v798, 0.0
    %800 = vadd.xlane.f32.xlu0 %v799
    %v801 = vpop.xlane.xlu0 %800
    %v802 = vrcp.pop %v801
    %v803 = vmul.f32 %v798, %v802
    %804 = vrot.lane.b32.xlu0 %v759, 64
    %v805 = vpop.permute.xlu0 %804
    %v808 = vsel %vm220, %v803, 0
    %810 = vmatpush.msra.mxu0 0.0
    %811 = vmatpush.msra.mxu0 0.0
    %812 = vmatpush.msra.mxu0 0.0
    %813 = vmatpush.msra.mxu0 0.0
    %814 = vmatpush.msra.mxu0 0.0
    %815 = vmatpush.msra.mxu0 0.0
    %816 = vmatpush.msra.mxu0 0.0
    %817 = vmatpush.msra.mxu0 0.0
    %818 = vmatpush.msra.mxu0 0.0
    %819 = vmatpush.msra.mxu0 0.0
    %820 = vmatpush.msra.mxu0 0.0
    %821 = vmatpush.msra.mxu0 0.0
    %822 = vmatpush.msra.mxu0 0.0
    %823 = vmatpush.msra.mxu0 0.0
    %824 = vmatpush.msra.mxu0 0.0
    %825 = vmatpush.msra.mxu0 %v805
    %826 = vmatmul.f32.gmra.mxu0 %v808
    %v827 = vpop.f32.mrf.mxu0
    %v828 = vadd.f32 0.0, %v827
    %829 = vdwg.mxu0
    %830 = vrot.lane.b32.xlu0 %v759, 112
    %v831 = vpop.permute.xlu0 %830
    %832 = vrot.lane.b32.xlu0 %v759, 80
    %v833 = vpop.permute.xlu0 %832
    %v834 = vsel %vm192, %v831, 0
    %v836 = vsel %vm192, %v833, 0
    %838 = vmatpush.xpose.msra.mxu0 0.0
    %839 = vmatpush.xpose.msra.mxu0 0.0
    %840 = vmatpush.xpose.msra.mxu0 0.0
    %841 = vmatpush.xpose.msra.mxu0 0.0
    %842 = vmatpush.xpose.msra.mxu0 0.0
    %843 = vmatpush.xpose.msra.mxu0 0.0
    %844 = vmatpush.xpose.msra.mxu0 0.0
    %845 = vmatpush.xpose.msra.mxu0 0.0
    %846 = vmatpush.xpose.msra.mxu0 0.0
    %847 = vmatpush.xpose.msra.mxu0 0.0
    %848 = vmatpush.xpose.msra.mxu0 0.0
    %849 = vmatpush.xpose.msra.mxu0 0.0
    %850 = vmatpush.xpose.msra.mxu0 0.0
    %851 = vmatpush.xpose.msra.mxu0 0.0
    %852 = vmatpush.xpose.msra.mxu0 0.0
    %853 = vmatpush.xpose.msra.mxu0 %v836
    %854 = vmatmul.f32.gmra.mxu0 %v834
    %v855 = vpop.f32.mrf.mxu0
    %v856 = vadd.f32 0.0, %v855
    %857 = vdwg.mxu0
    %v858 = vmul.f32 %v856, 0.25
    %v859 = vadd.f32 %v858, %v218
    %v860 = vsel %vm220, %v859, -inf
    %861 = vmax.xlane.f32.xlu0 %v860
    %v862 = vpop.xlane.xlu0 %861
    %v863 = vsub.f32 %v859, %v862
    %v864 = vmul.f32 %v863, 1.442695
    %v865 = vpow.pop %v864
    %v866 = vsel %vm220, %v865, 0.0
    %867 = vadd.xlane.f32.xlu0 %v866
    %v868 = vpop.xlane.xlu0 %867
    %v869 = vrcp.pop %v868
    %v870 = vmul.f32 %v865, %v869
    %871 = vrot.lane.b32.xlu0 %v759, 48
    %v872 = vpop.permute.xlu0 %871
    %v875 = vsel %vm220, %v870, 0
    %877 = vmatpush.msra.mxu0 0.0
    %878 = vmatpush.msra.mxu0 0.0
    %879 = vmatpush.msra.mxu0 0.0
    %880 = vmatpush.msra.mxu0 0.0
    %881 = vmatpush.msra.mxu0 0.0
    %882 = vmatpush.msra.mxu0 0.0
    %883 = vmatpush.msra.mxu0 0.0
    %884 = vmatpush.msra.mxu0 0.0
    %885 = vmatpush.msra.mxu0 0.0
    %886 = vmatpush.msra.mxu0 0.0
    %887 = vmatpush.msra.mxu0 0.0
    %888 = vmatpush.msra.mxu0 0.0
    %889 = vmatpush.msra.mxu0 0.0
    %890 = vmatpush.msra.mxu0 0.0
    %891 = vmatpush.msra.mxu0 0.0
    %892 = vmatpush.msra.mxu0 %v872
    %893 = vmatmul.f32.gmra.mxu0 %v875
    %v894 = vpop.f32.mrf.mxu0
    %v895 = vadd.f32 0.0, %v894
    %896 = vdwg.mxu0
    %898 = vrot.lane.b32.xlu0 %v895, 16
    %v899 = vpop.permute.xlu0 %898
    %v901 = vsel %vm192, %v828, %v899
    %903 = vrot.lane.b32.xlu0 %v762, 96
    %v904 = vpop.permute.xlu0 %903
    %v905 = vsel %vm192, %v762, 0
    %v907 = vsel %vm192, %v904, 0
    %909 = vmatpush.xpose.msra.mxu0 0.0
    %910 = vmatpush.xpose.msra.mxu0 0.0
    %911 = vmatpush.xpose.msra.mxu0 0.0
    %912 = vmatpush.xpose.msra.mxu0 0.0
    %913 = vmatpush.xpose.msra.mxu0 0.0
    %914 = vmatpush.xpose.msra.mxu0 0.0
    %915 = vmatpush.xpose.msra.mxu0 0.0
    %916 = vmatpush.xpose.msra.mxu0 0.0
    %917 = vmatpush.xpose.msra.mxu0 0.0
    %918 = vmatpush.xpose.msra.mxu0 0.0
    %919 = vmatpush.xpose.msra.mxu0 0.0
    %920 = vmatpush.xpose.msra.mxu0 0.0
    %921 = vmatpush.xpose.msra.mxu0 0.0
    %922 = vmatpush.xpose.msra.mxu0 0.0
    %923 = vmatpush.xpose.msra.mxu0 0.0
    %924 = vmatpush.xpose.msra.mxu0 %v907
    %925 = vmatmul.f32.gmra.mxu0 %v905
    %v926 = vpop.f32.mrf.mxu0
    %v927 = vadd.f32 0.0, %v926
    %928 = vdwg.mxu0
    %v929 = vmul.f32 %v927, 0.25
    %v930 = vadd.f32 %v929, %v358
    %v931 = vsel %vm220, %v930, -inf
    %932 = vmax.xlane.f32.xlu0 %v931
    %v933 = vpop.xlane.xlu0 %932
    %v934 = vsub.f32 %v930, %v933
    %v935 = vmul.f32 %v934, 1.442695
    %v936 = vpow.pop %v935
    %v937 = vsel %vm220, %v936, 0.0
    %938 = vadd.xlane.f32.xlu0 %v937
    %v939 = vpop.xlane.xlu0 %938
    %v940 = vrcp.pop %v939
    %v941 = vmul.f32 %v936, %v940
    %942 = vrot.lane.b32.xlu0 %v762, 64
    %v943 = vpop.permute.xlu0 %942
    %v946 = vsel %vm220, %v941, 0
    %948 = vmatpush.msra.mxu0 0.0
    %949 = vmatpush.msra.mxu0 0.0
    %950 = vmatpush.msra.mxu0 0.0
    %951 = vmatpush.msra.mxu0 0.0
    %952 = vmatpush.msra.mxu0 0.0
    %953 = vmatpush.msra.mxu0 0.0
    %954 = vmatpush.msra.mxu0 0.0
    %955 = vmatpush.msra.mxu0 0.0
    %956 = vmatpush.msra.mxu0 0.0
    %957 = vmatpush.msra.mxu0 0.0
    %958 = vmatpush.msra.mxu0 0.0
    %959 = vmatpush.msra.mxu0 0.0
    %960 = vmatpush.msra.mxu0 0.0
    %961 = vmatpush.msra.mxu0 0.0
    %962 = vmatpush.msra.mxu0 0.0
    %963 = vmatpush.msra.mxu0 %v943
    %964 = vmatmul.f32.gmra.mxu0 %v946
    %v965 = vpop.f32.mrf.mxu0
    %v966 = vadd.f32 0.0, %v965
    %967 = vdwg.mxu0
    %968 = vrot.lane.b32.xlu0 %v762, 112
    %v969 = vpop.permute.xlu0 %968
    %970 = vrot.lane.b32.xlu0 %v762, 80
    %v971 = vpop.permute.xlu0 %970
    %v972 = vsel %vm192, %v969, 0
    %v974 = vsel %vm192, %v971, 0
    %976 = vmatpush.xpose.msra.mxu0 0.0
    %977 = vmatpush.xpose.msra.mxu0 0.0
    %978 = vmatpush.xpose.msra.mxu0 0.0
    %979 = vmatpush.xpose.msra.mxu0 0.0
    %980 = vmatpush.xpose.msra.mxu0 0.0
    %981 = vmatpush.xpose.msra.mxu0 0.0
    %982 = vmatpush.xpose.msra.mxu0 0.0
    %983 = vmatpush.xpose.msra.mxu0 0.0
    %984 = vmatpush.xpose.msra.mxu0 0.0
    %985 = vmatpush.xpose.msra.mxu0 0.0
    %986 = vmatpush.xpose.msra.mxu0 0.0
    %987 = vmatpush.xpose.msra.mxu0 0.0
    %988 = vmatpush.xpose.msra.mxu0 0.0
    %989 = vmatpush.xpose.msra.mxu0 0.0
    %990 = vmatpush.xpose.msra.mxu0 0.0
    %991 = vmatpush.xpose.msra.mxu0 %v974
    %992 = vmatmul.f32.gmra.mxu0 %v972
    %v993 = vpop.f32.mrf.mxu0
    %v994 = vadd.f32 0.0, %v993
    %995 = vdwg.mxu0
    %v996 = vmul.f32 %v994, 0.25
    %v997 = vadd.f32 %v996, %v358
    %v998 = vsel %vm220, %v997, -inf
    %999 = vmax.xlane.f32.xlu0 %v998
    %v1000 = vpop.xlane.xlu0 %999
    %v1001 = vsub.f32 %v997, %v1000
    %v1002 = vmul.f32 %v1001, 1.442695
    %v1003 = vpow.pop %v1002
    %v1004 = vsel %vm220, %v1003, 0.0
    %1005 = vadd.xlane.f32.xlu0 %v1004
    %v1006 = vpop.xlane.xlu0 %1005
    %v1007 = vrcp.pop %v1006
    %v1008 = vmul.f32 %v1003, %v1007
    %1009 = vrot.lane.b32.xlu0 %v762, 48
    %v1010 = vpop.permute.xlu0 %1009
    %v1013 = vsel %vm220, %v1008, 0
    %1015 = vmatpush.msra.mxu0 0.0
    %1016 = vmatpush.msra.mxu0 0.0
    %1017 = vmatpush.msra.mxu0 0.0
    %1018 = vmatpush.msra.mxu0 0.0
    %1019 = vmatpush.msra.mxu0 0.0
    %1020 = vmatpush.msra.mxu0 0.0
    %1021 = vmatpush.msra.mxu0 0.0
    %1022 = vmatpush.msra.mxu0 0.0
    %1023 = vmatpush.msra.mxu0 0.0
    %1024 = vmatpush.msra.mxu0 0.0
    %1025 = vmatpush.msra.mxu0 0.0
    %1026 = vmatpush.msra.mxu0 0.0
    %1027 = vmatpush.msra.mxu0 0.0
    %1028 = vmatpush.msra.mxu0 0.0
    %1029 = vmatpush.msra.mxu0 0.0
    %1030 = vmatpush.msra.mxu0 %v1010
    %1031 = vmatmul.f32.gmra.mxu0 %v1013
    %v1032 = vpop.f32.mrf.mxu0
    %v1033 = vadd.f32 0.0, %v1032
    %1034 = vdwg.mxu0
    %1036 = vrot.lane.b32.xlu0 %v1033, 16
    %v1037 = vpop.permute.xlu0 %1036
    %v1039 = vsel %vm192, %v966, %v1037
    %v1041 = vperm.slane %v713, 0
    %v1044 = vsel %vm70, %v901, 0
    %v1047 = vsel %vm70, %v1039, 0
    %1049 = vmatpush.msra.mxu0 0.0
    %1050 = vmatpush.msra.mxu0 0.0
    %1051 = vmatpush.msra.mxu0 0.0
    %1052 = vmatpush.msra.mxu0 0.0
    %1053 = vmatpush.msra.mxu0 0.0
    %1054 = vmatpush.msra.mxu0 0.0
    %1055 = vmatpush.msra.mxu0 0.0
    %1056 = vmatpush.msra.mxu0 0.0
    %1057 = vmatpush.msra.mxu0 0.0
    %1058 = vmatpush.msra.mxu0 0.0
    %1059 = vmatpush.msra.mxu0 0.0
    %1060 = vmatpush.msra.mxu0 0.0
    %1061 = vmatpush.msra.mxu0 %v711
    %1062 = vmatpush.msra.mxu0 %v710
    %1063 = vmatpush.msra.mxu0 %v709
    %1064 = vmatpush.msra.mxu0 %v708
    %1065 = vmatmul.f32.gmra.mxu0 %v1044
    %v1066 = vpop.f32.mrf.mxu0
    %v1067 = vadd.f32 %v1041, %v1066
    %1068 = vmatmul.f32.gmra.mxu0 %v1047
    %v1069 = vpop.f32.mrf.mxu0
    %v1070 = vadd.f32 %v1041, %v1069
    %1071 = vdwg.mxu0
    %v1072 = vadd.f32 %v698, %v1067
    %v1073 = vadd.f32 %v699, %v1070
    %s1074 = scalar_lea.vmem %s8, 1
    %v1075 = vld [vmem:[%s1074] sm:$0x1]
    %s1076 = scalar_lea.vmem %s9, 1
    %v1077 = vld [vmem:[%s1076] sm:$0x1]
    %v1078 = vsel %vm70, %v1072, 0.0
    %1079 = vadd.xlane.f32.xlu0 %v1078
    %v1080 = vpop.xlane.xlu0 %1079
    %v1081 = vsel %vm70, %v1073, 0.0
    %1082 = vadd.xlane.f32.xlu0 %v1081
    %v1083 = vpop.xlane.xlu0 %1082
    %v1084 = vmul.f32 %v1080, %v83
    %v1085 = vmul.f32 %v1083, %v83
    %v1086 = vsub.f32 %v1072, %v1084
    %v1087 = vsub.f32 %v1073, %v1085
    %v1088 = vmul.f32 %v1086, %v1086
    %v1089 = vmul.f32 %v1087, %v1087
    %v1090 = vsel %vm70, %v1088, 0.0
    %1091 = vadd.xlane.f32.xlu0 %v1090
    %v1092 = vpop.xlane.xlu0 %1091
    %v1093 = vsel %vm70, %v1089, 0.0
    %1094 = vadd.xlane.f32.xlu0 %v1093
    %v1095 = vpop.xlane.xlu0 %1094
    %v1096 = vmul.f32 %v1092, %v83
    %v1097 = vmul.f32 %v1095, %v83
    %v1098 = vadd.f32 %v1096, 1e-12
    %v1099 = vadd.f32 %v1097, 1e-12
    %v1100 = vrsqrt.pop %v1098
    %v1101 = vmul.f32 %v1100, %v1098
    %v1102 = vmul.f32 %v1101, %v1100
    %v1103 = vmul.f32 0.5, %v1102
    %v1104 = vsub.f32 1.5, %v1103
    %v1105 = vmul.f32 %v1100, %v1104
    %vm1106 = vweird.f32 %v1098
    %vm1107 = vweird.f32 %v1100
    %vm1108 = vmor %vm1106, %vm1107
    %v1109 = vsel %vm1108, %v1100, %v1105
    %v1110 = vrsqrt.pop %v1099
    %v1111 = vmul.f32 %v1110, %v1099
    %v1112 = vmul.f32 %v1111, %v1110
    %v1113 = vmul.f32 0.5, %v1112
    %v1114 = vsub.f32 1.5, %v1113
    %v1115 = vmul.f32 %v1110, %v1114
    %vm1116 = vweird.f32 %v1099
    %vm1117 = vweird.f32 %v1110
    %vm1118 = vmor %vm1116, %vm1117
    %v1119 = vsel %vm1118, %v1110, %v1115
    %v1120 = vmul.f32 %v1086, %v1109
    %v1121 = vmul.f32 %v1087, %v1119
    %v1123 = vperm.slane %v1075, 0
    %v1125 = vmul.f32 %v1120, %v1123
    %v1126 = vmul.f32 %v1121, %v1123
    %v1128 = vperm.slane %v1077, 0
    %v1130 = vadd.f32 %v1125, %v1128
    %v1131 = vadd.f32 %v1126, %v1128
    %v1133 = vperm.slane %v720, 0
    %v1136 = vsel %vm70, %v1130, 0
    %v1139 = vsel %vm70, %v1131, 0
    %1141 = vmatpush.msra.mxu0 0.0
    %1142 = vmatpush.msra.mxu0 0.0
    %1143 = vmatpush.msra.mxu0 0.0
    %1144 = vmatpush.msra.mxu0 0.0
    %1145 = vmatpush.msra.mxu0 0.0
    %1146 = vmatpush.msra.mxu0 0.0
    %1147 = vmatpush.msra.mxu0 0.0
    %1148 = vmatpush.msra.mxu0 0.0
    %1149 = vmatpush.msra.mxu0 0.0
    %1150 = vmatpush.msra.mxu0 0.0
    %1151 = vmatpush.msra.mxu0 0.0
    %1152 = vmatpush.msra.mxu0 0.0
    %1153 = vmatpush.msra.mxu0 %v718
    %1154 = vmatpush.msra.mxu0 %v717
    %1155 = vmatpush.msra.mxu0 %v716
    %1156 = vmatpush.msra.mxu0 %v715
    %1157 = vmatmul.f32.gmra.mxu0 %v1136
    %v1158 = vpop.f32.mrf.mxu0
    %v1159 = vadd.f32 %v1133, %v1158
    %1160 = vmatmul.f32.gmra.mxu0 %v1139
    %v1161 = vpop.f32.mrf.mxu0
    %v1162 = vadd.f32 %v1133, %v1161
    %1163 = vdwg.mxu0
    %v1164 = vmul.f32 %v1159, 0.5
    %v1165 = vmul.f32 %v1162, 0.5
    %v1166 = vmul.f32 %v1159, 0.044715
    %v1167 = vmul.f32 %v1162, 0.044715
    %v1168 = vmul.f32 %v1166, %v1159
    %v1169 = vmul.f32 %v1167, %v1162
    %v1170 = vmul.f32 %v1168, %v1159
    %v1171 = vmul.f32 %v1169, %v1162
    %v1172 = vadd.f32 %v1159, %v1170
    %v1173 = vadd.f32 %v1162, %v1171
    %v1174 = vmul.f32 %v1172, 0.7978846
    %v1175 = vmul.f32 %v1173, 0.7978846
    %v1176 = vtanh.pop %v1174
    %v1177 = vtanh.pop %v1175
    %v1178 = vadd.f32 %v1176, 1.0
    %v1179 = vadd.f32 %v1177, 1.0
    %v1180 = vmul.f32 %v1164, %v1178
    %v1181 = vmul.f32 %v1165, %v1179
    %v1183 = vperm.slane %v731, 0
    %v1186 = vsel %vm612, %v1180, 0
    %v1189 = vsel %vm612, %v1181, 0
    %1191 = vmatpush.msra.mxu0 0.0
    %1192 = vmatpush.msra.mxu0 0.0
    %1193 = vmatpush.msra.mxu0 0.0
    %1194 = vmatpush.msra.mxu0 0.0
    %1195 = vmatpush.msra.mxu0 0.0
    %1196 = vmatpush.msra.mxu0 0.0
    %1197 = vmatpush.msra.mxu0 0.0
    %1198 = vmatpush.msra.mxu0 0.0
    %1199 = vmatpush.msra.mxu0 %v729
    %1200 = vmatpush.msra.mxu0 %v728
    %1201 = vmatpush.msra.mxu0 %v727
    %1202 = vmatpush.msra.mxu0 %v726
    %1203 = vmatpush.msra.mxu0 %v725
    %1204 = vmatpush.msra.mxu0 %v724
    %1205 = vmatpush.msra.mxu0 %v723
    %1206 = vmatpush.msra.mxu0 %v722
    %1207 = vmatmul.f32.gmra.mxu0 %v1186
    %v1208 = vpop.f32.mrf.mxu0
    %v1209 = vadd.f32 %v1183, %v1208
    %1210 = vmatmul.f32.gmra.mxu0 %v1189
    %v1211 = vpop.f32.mrf.mxu0
    %v1212 = vadd.f32 %v1183, %v1211
    %1213 = vdwg.mxu0
    %v1214 = vadd.f32 %v1130, %v1209
    %v1215 = vadd.f32 %v1131, %v1212
    %s1216 = scalar_lea.vmem %s14, 1
    %v1217 = vld [vmem:[%s1216] sm:$0x1]
    %s1218 = scalar_lea.vmem %s15, 1
    %v1219 = vld [vmem:[%s1218] sm:$0x1]
    %v1220 = vsel %vm70, %v1214, 0.0
    %1221 = vadd.xlane.f32.xlu0 %v1220
    %v1222 = vpop.xlane.xlu0 %1221
    %v1223 = vsel %vm70, %v1215, 0.0
    %1224 = vadd.xlane.f32.xlu0 %v1223
    %v1225 = vpop.xlane.xlu0 %1224
    %v1226 = vmul.f32 %v1222, %v83
    %v1227 = vmul.f32 %v1225, %v83
    %v1228 = vsub.f32 %v1214, %v1226
    %v1229 = vsub.f32 %v1215, %v1227
    %v1230 = vmul.f32 %v1228, %v1228
    %v1231 = vmul.f32 %v1229, %v1229
    %v1232 = vsel %vm70, %v1230, 0.0
    %1233 = vadd.xlane.f32.xlu0 %v1232
    %v1234 = vpop.xlane.xlu0 %1233
    %v1235 = vsel %vm70, %v1231, 0.0
    %1236 = vadd.xlane.f32.xlu0 %v1235
    %v1237 = vpop.xlane.xlu0 %1236
    %v1238 = vmul.f32 %v1234, %v83
    %v1239 = vmul.f32 %v1237, %v83
    %v1240 = vadd.f32 %v1238, 1e-12
    %v1241 = vadd.f32 %v1239, 1e-12
    %v1242 = vrsqrt.pop %v1240
    %v1243 = vmul.f32 %v1242, %v1240
    %v1244 = vmul.f32 %v1243, %v1242
    %v1245 = vmul.f32 0.5, %v1244
    %v1246 = vsub.f32 1.5, %v1245
    %v1247 = vmul.f32 %v1242, %v1246
    %vm1248 = vweird.f32 %v1240
    %vm1249 = vweird.f32 %v1242
    %vm1250 = vmor %vm1248, %vm1249
    %v1251 = vsel %vm1250, %v1242, %v1247
    %v1252 = vrsqrt.pop %v1241
    %v1253 = vmul.f32 %v1252, %v1241
    %v1254 = vmul.f32 %v1253, %v1252
    %v1255 = vmul.f32 0.5, %v1254
    %v1256 = vsub.f32 1.5, %v1255
    %v1257 = vmul.f32 %v1252, %v1256
    %vm1258 = vweird.f32 %v1241
    %vm1259 = vweird.f32 %v1252
    %vm1260 = vmor %vm1258, %vm1259
    %v1261 = vsel %vm1260, %v1252, %v1257
    %v1262 = vmul.f32 %v1228, %v1251
    %v1263 = vmul.f32 %v1229, %v1261
    %v1265 = vperm.slane %v1217, 0
    %v1267 = vmul.f32 %v1262, %v1265
    %v1268 = vmul.f32 %v1263, %v1265
    %v1270 = vperm.slane %v1219, 0
    %v1272 = vadd.f32 %v1267, %v1270
    %v1273 = vadd.f32 %v1268, %v1270
    %v1275 = vrot.slane %v1273, 7
    %vm1277 = vcmask 1040384
    %v1278 = vsel %vm1277, %v1272, %v1275
    %v1279 = vld [vmem:[%s16] sm:$0xff]
    %v1280 = vld [vmem:[%s16 + $0x8] sm:$0xff]
    %v1281 = vld [vmem:[%s16 + $0x10] sm:$0xff]
    %v1282 = vld [vmem:[%s16 + $0x18] sm:$0xff]
    %v1283 = vld [vmem:[%s17] sm:$0x1]
    %v1285 = vperm.slane %v1283, 0
    %v1288 = vsel %vm70, %v1278, 0
    %1290 = vmatpush.msra.mxu0 0.0
    %1291 = vmatpush.msra.mxu0 0.0
    %1292 = vmatpush.msra.mxu0 0.0
    %1293 = vmatpush.msra.mxu0 0.0
    %1294 = vmatpush.msra.mxu0 0.0
    %1295 = vmatpush.msra.mxu0 0.0
    %1296 = vmatpush.msra.mxu0 0.0
    %1297 = vmatpush.msra.mxu0 0.0
    %1298 = vmatpush.msra.mxu0 0.0
    %1299 = vmatpush.msra.mxu0 0.0
    %1300 = vmatpush.msra.mxu0 0.0
    %1301 = vmatpush.msra.mxu0 0.0
    %1302 = vmatpush.msra.mxu0 %v1282
    %1303 = vmatpush.msra.mxu0 %v1281
    %1304 = vmatpush.msra.mxu0 %v1280
    %1305 = vmatpush.msra.mxu0 %v1279
    %1306 = vmatmul.f32.gmra.mxu0 %v1288
    %v1307 = vpop.f32.mrf.mxu0
    %v1308 = vadd.f32 %v1285, %v1307
    %1309 = vdwg.mxu0
    %v1310 = vtanh.pop %v1308
    %v1311 = vld [vmem:[%s18] sm:$0xff]
    %v1312 = vld [vmem:[%s18 + $0x8] sm:$0xff]
    %v1313 = vld [vmem:[%s18 + $0x10] sm:$0xff]
    %v1314 = vld [vmem:[%s18 + $0x18] sm:$0xff]
    %v1315 = vld [vmem:[%s19] sm:$0x1]
    %v1317 = vperm.slane %v1315, 0
    %v1320 = vsel %vm70, %v1310, 0
    %1322 = vmatpush.msra.mxu0 0.0
    %1323 = vmatpush.msra.mxu0 0.0
    %1324 = vmatpush.msra.mxu0 0.0
    %1325 = vmatpush.msra.mxu0 0.0
    %1326 = vmatpush.msra.mxu0 0.0
    %1327 = vmatpush.msra.mxu0 0.0
    %1328 = vmatpush.msra.mxu0 0.0
    %1329 = vmatpush.msra.mxu0 0.0
    %1330 = vmatpush.msra.mxu0 0.0
    %1331 = vmatpush.msra.mxu0 0.0
    %1332 = vmatpush.msra.mxu0 0.0
    %1333 = vmatpush.msra.mxu0 0.0
    %1334 = vmatpush.msra.mxu0 %v1314
    %1335 = vmatpush.msra.mxu0 %v1313
    %1336 = vmatpush.msra.mxu0 %v1312
    %1337 = vmatpush.msra.mxu0 %v1311
    %1338 = vmatmul.f32.gmra.mxu0 %v1320
    %v1339 = vpop.f32.mrf.mxu0
    %v1340 = vadd.f32 %v1317, %v1339
    %1341 = vdwg.mxu0
    %1342 = vst [vmem:[#allocation2] sm:$0x3] %v1340
    // Predicated region
    $region82: #{bert_classify_forward.1} parent=1 // pred_check
      _
    $region83: #{bert_classify_forward.1} parent=1 // pred_check_branch
      %1344 = sbr.rel (0) target = $region85
    $region84: #{bert_classify_forward.1} parent=1 // pred_region
      %1346 = vsyncadd [#allocation3], 0
      %s1348 = sshll.u32 [#allocation2], 4
      %s1349 = int_to_ptr.vmem [resolvable:$true] %s1348
      %s1350 = sshll.u32 %s20, 4
      %s1351 = int_to_ptr.hbm [resolvable:$true] %s1350
      %1353 = dma.vmem_to_hbm [thread:$0]  %s1349, 32, %s1351, [#allocation3]
    $region85: #{bert_classify_forward.1} parent=1 // pred_fallthru
      _
    // Predicated region
    $region86: #{bert_classify_forward.1} parent=1 // pred_check
      _
    $region87: #{bert_classify_forward.1} parent=1 // pred_check_branch
      %1355 = sbr.rel (0) target = $region89
    $region88: #{bert_classify_forward.1} parent=1 // pred_region
      %1357 = dma.done [#allocation3], 32
    $region89: #{bert_classify_forward.1} parent=1 // pred_fallthru
      _
    %1358 = vsyncpa [#allocation3], 1

</llo_original>
